<compile_context>
chip_gen: v7x
topology: tpu7x:2x2x1
jax: 0.10.0
libtpu: 0.0.40
codegen_flags: <defaults>
</compile_context>

<pallas_src>
import functools

import jax
import jax.numpy as jnp
from jax import lax
from jax.experimental import pallas as pl
from jax.experimental.pallas import tpu as pltpu

_LANE = 128


# ----------------------------------------------------------------------------
# helpers
# ----------------------------------------------------------------------------
def _round_up(n, m):
    return ((n + m - 1) // m) * m


def _hardswish(x):
    # torch.nn.Hardswish: x * relu6(x + 3) / 6   (note: f(0) == 0, required!)
    return x * jnp.clip(x + 3.0, 0.0, 6.0) * (1.0 / 6.0)


def _pad2(a, rows, cols):
    return jnp.pad(a, ((0, rows - a.shape[0]), (0, cols - a.shape[1])))


def _inv_spec(shape):
    """Full-array block, constant index_map, single-buffered (grid-invariant)."""
    zeros = (0,) * len(shape)
    return pl.BlockSpec(shape, lambda b, _z=zeros: _z,
                        pipeline_mode=pl.Buffered(1))


def _vmem_limit(need_bytes):
    # Floor at 32 MiB (>= default scoped limit everywhere), cap at 64 MiB so the
    # request is valid on v7x's 64 MiB physical VMEM as well as v5e/v6e.
    return int(min(max(int(need_bytes * 1.3) + (2 << 20), 32 << 20), 64 << 20))


# ----------------------------------------------------------------------------
# kernels
# ----------------------------------------------------------------------------
def _ln_triu_kernel(x_ref, g_ref, be_ref, w1_ref, b1_ref, w2_ref, b2_ref,
                    o_ref, *, t, n_valid, eps):
    """Per-batch LayerNorm over (C, t) then TriU -> Hardswish -> TriU.

    Blocks: x/o are (1, C, Tp); gamma/beta (C, Tp); W (Tp, Tp); b (1, Tp).
    """
    x = x_ref[0].astype(jnp.float32)                       # (C, Tp)
    col = lax.broadcasted_iota(jnp.int32, x.shape, 1)
    mask = (col < t).astype(jnp.float32)                   # ignore time padding
    inv_n = 1.0 / float(n_valid)

    xm = x * mask
    row_sum = jnp.sum(xm, axis=1, keepdims=True)           # (C, 1) lane reduce
    mean = jnp.sum(row_sum, axis=0, keepdims=True) * inv_n  # (1, 1)
    d = (x - mean) * mask                                   # two-pass variance
    row_sq = jnp.sum(d * d, axis=1, keepdims=True)
    var = jnp.sum(row_sq, axis=0, keepdims=True) * inv_n
    rstd = lax.rsqrt(var + eps)

    # gamma/beta are zero in padded time columns -> xn is exactly 0 there;
    # with hardswish(0) == 0 and zero-padded W rows the padding never leaks.
    xn = (x - mean) * rstd * g_ref[...] + be_ref[...]

    h = jnp.dot(xn.astype(w1_ref.dtype), w1_ref[...],
                preferred_element_type=jnp.float32) + b1_ref[...]
    h = _hardswish(h)
    out = jnp.dot(h.astype(w2_ref.dtype), w2_ref[...],
                  preferred_element_type=jnp.float32) + b2_ref[...]
    o_ref[0] = out.astype(o_ref.dtype)


def _conv_triu_kernel(p_ref, cw_ref, cb_ref, w1_ref, b1_ref, w2_ref, b2_ref,
                      o_ref):
    """Conv1d(kernel=stride=k) as (C, C*k) @ (C*k, To), then TriU->HSwish->TriU.

    p_ref block is (1, C*k, Top) transposed patches: lane axis = time, so the
    conv output is lane-dense and feeds the TriU matmuls with no transpose.
    """
    z = jnp.dot(cw_ref[...], p_ref[0],
                preferred_element_type=jnp.float32) + cb_ref[...]   # (C, Top)
    # Conv bias leaks into padded time columns of z, but W1's padded rows are
    # zero, so those columns never reach real outputs.
    h = jnp.dot(z.astype(w1_ref.dtype), w1_ref[...],
                preferred_element_type=jnp.float32) + b1_ref[...]
    h = _hardswish(h)
    out = jnp.dot(h.astype(w2_ref.dtype), w2_ref[...],
                  preferred_element_type=jnp.float32) + b2_ref[...]
    o_ref[0] = out.astype(o_ref.dtype)


# ----------------------------------------------------------------------------
# pallas_call wrappers
# ----------------------------------------------------------------------------
def _fused_scale0(x3, gamma_p, beta_p, w1p, b1p, w2p, b2p, *, t, eps=1e-5):
    bsz, c, tp = x3.shape
    cdtype = w1p.dtype
    out_dtype = cdtype
    w_item = jnp.dtype(cdtype).itemsize
    x_item = jnp.dtype(x3.dtype).itemsize
    o_item = jnp.dtype(out_dtype).itemsize

    need = (2 * tp * tp * w_item                 # W1 + W2, single-buffered
            + 2 * c * tp * 4 + 2 * tp * 4        # gamma/beta + biases
            + 2 * c * tp * x_item                # x tile, double-buffered
            + 2 * c * tp * o_item)               # out tile, double-buffered

    cost = pl.CostEstimate(
        flops=int(bsz * (4 * c * tp * tp + 8 * c * tp)),
        transcendentals=int(bsz),
        bytes_accessed=int(x_item * x3.size
                           + w_item * (w1p.size + w2p.size)
                           + 4 * (gamma_p.size + beta_p.size + b1p.size + b2p.size)
                           + o_item * bsz * c * tp))

    return pl.pallas_call(
        functools.partial(_ln_triu_kernel, t=t, n_valid=c * t, eps=eps),
        out_shape=jax.ShapeDtypeStruct((bsz, c, tp), out_dtype),
        grid_spec=pltpu.PrefetchScalarGridSpec(
            num_scalar_prefetch=0,
            grid=(bsz,),
            in_specs=[
                pl.BlockSpec((1, c, tp), lambda b: (b, 0, 0)),
                _inv_spec((c, tp)), _inv_spec((c, tp)),
                _inv_spec((tp, tp)), _inv_spec((1, tp)),
                _inv_spec((tp, tp)), _inv_spec((1, tp)),
            ],
            out_specs=pl.BlockSpec((1, c, tp), lambda b: (b, 0, 0)),
        ),
        compiler_params=pltpu.CompilerParams(
            dimension_semantics=("parallel",),
            vmem_limit_bytes=_vmem_limit(need)),
        cost_estimate=cost,
    )(x3, gamma_p, beta_p, w1p, b1p, w2p, b2p)


def _fused_conv_scale(patches, cw, cb, w1p, b1p, w2p, b2p):
    bsz, ck, top = patches.shape
    c = cw.shape[0]
    cdtype = w1p.dtype
    out_dtype = cdtype
    w_item = jnp.dtype(cdtype).itemsize
    p_item = jnp.dtype(patches.dtype).itemsize
    o_item = jnp.dtype(out_dtype).itemsize

    need = (2 * top * top * w_item + c * ck * w_item + c * 4 + 2 * top * 4
            + 2 * ck * top * p_item
            + 2 * c * top * o_item)

    cost = pl.CostEstimate(
        flops=int(bsz * (2 * c * ck * top + 4 * c * top * top + 8 * c * top)),
        transcendentals=0,
        bytes_accessed=int(p_item * patches.size
                           + w_item * (w1p.size + w2p.size + cw.size)
                           + 4 * (cb.size + b1p.size + b2p.size)
                           + o_item * bsz * c * top))

    return pl.pallas_call(
        _conv_triu_kernel,
        out_shape=jax.ShapeDtypeStruct((bsz, c, top), out_dtype),
        grid_spec=pltpu.PrefetchScalarGridSpec(
            num_scalar_prefetch=0,
            grid=(bsz,),
            in_specs=[
                pl.BlockSpec((1, ck, top), lambda b: (b, 0, 0)),
                _inv_spec((c, ck)), _inv_spec((c, 1)),
                _inv_spec((top, top)), _inv_spec((1, top)),
                _inv_spec((top, top)), _inv_spec((1, top)),
            ],
            out_specs=pl.BlockSpec((1, c, top), lambda b: (b, 0, 0)),
        ),
        compiler_params=pltpu.CompilerParams(
            dimension_semantics=("parallel",),
            vmem_limit_bytes=_vmem_limit(need)),
        cost_estimate=cost,
    )(patches, cw, cb, w1p, b1p, w2p, b2p)


# ----------------------------------------------------------------------------
# one-time weight preparation (hoisted out of the forward hot path)
# ----------------------------------------------------------------------------
def prepare_params(params, time_step, channel, scale_count=1,
                   compute_dtype=jnp.float32):
    """Pad weights to lane-dense multiples of 128 and cast once."""
    prep = {}
    tp0 = _round_up(time_step, _LANE)
    prep["gamma"] = _pad2(params["ln_gamma"].astype(jnp.float32), channel, tp0)
    prep["beta"] = _pad2(params["ln_beta"].astype(jnp.float32), channel, tp0)
    for i in range(scale_count):
        t_i = time_step // (2 ** i)
        tpi = _round_up(t_i, _LANE)
        prep[f"w1t_{i}"] = _pad2(params[f"w1t_{i}"].astype(jnp.float32),
                                 tpi, tpi).astype(compute_dtype)
        prep[f"w2t_{i}"] = _pad2(params[f"w2t_{i}"].astype(jnp.float32),
                                 tpi, tpi).astype(compute_dtype)
        prep[f"b1_{i}"] = jnp.pad(params[f"b1_{i}"].astype(jnp.float32),
                                  (0, tpi - t_i)).reshape(1, tpi)
        prep[f"b2_{i}"] = jnp.pad(params[f"b2_{i}"].astype(jnp.float32),
                                  (0, tpi - t_i)).reshape(1, tpi)
        if i >= 1:
            k = 2 ** i
            w = params[f"conv_w_{i}"].astype(jnp.float32)
            prep[f"conv_w_{i}"] = w.reshape(channel, channel * k).astype(compute_dtype)
            prep[f"conv_b_{i}"] = params[f"conv_b_{i}"].astype(jnp.float32).reshape(channel, 1)
    return prep


# ----------------------------------------------------------------------------
# full forward
# ----------------------------------------------------------------------------
@functools.partial(jax.jit, static_argnames=("scale_count", "compute_dtype"))
def multi_scale_time_mixer(x, prep, *, scale_count=1,
                           compute_dtype=jnp.float32):
    """x: (B, time_step, channel) -> (B, channel, sum_i time_step // 2**i)."""
    bsz, t, c = x.shape
    xp = jnp.transpose(x, (0, 2, 1))                        # (B, C, T)
    tp0 = _round_up(t, _LANE)
    outs = []

    # ---- scale 0: fused LayerNorm([T, C]) + TriU + Hardswish + TriU
    x3 = jnp.pad(xp, ((0, 0), (0, 0), (0, tp0 - t))).astype(compute_dtype)
    y0 = _fused_scale0(x3, prep["gamma"], prep["beta"],
                       prep["w1t_0"], prep["b1_0"],
                       prep["w2t_0"], prep["b2_0"], t=t)
    outs.append(y0[:, :, :t])

    # ---- scales >= 1: fused Conv1d(k=stride=2^i) + TriU + Hardswish + TriU
    for i in range(1, scale_count):
        k = 2 ** i
        to = (t - k) // k + 1
        topi = _round_up(to, _LANE)
        # Transposed patches (B, C*k, To): layout plumbing kept in XLA so the
        # kernel's conv output has a lane-dense time axis (no output transpose).
        pat = xp[:, :, :to * k].reshape(bsz, c, to, k)
        pat = jnp.transpose(pat, (0, 1, 3, 2)).reshape(bsz, c * k, to)
        pat = jnp.pad(pat, ((0, 0), (0, 0), (0, topi - to))).astype(compute_dtype)
        yi = _fused_conv_scale(pat, prep[f"conv_w_{i}"], prep[f"conv_b_{i}"],
                               prep[f"w1t_{i}"], prep[f"b1_{i}"],
                               prep[f"w2t_{i}"], prep[f"b2_{i}"])
        outs.append(yi[:, :, :to])

    return jnp.concatenate(outs, axis=-1)


# ----------------------------------------------------------------------------
# parameter construction (TriU folded into a triangular matrix) + reference
# ----------------------------------------------------------------------------
def _init_triu(key, t, dtype):
    """TriU(t) == x @ Wt + b with Wt[j, i] != 0 only for j <= i."""
    kw, kb = jax.random.split(key)
    bounds = 1.0 / jnp.sqrt(jnp.arange(1, t + 1, dtype=jnp.float32))
    w = jax.random.uniform(kw, (t, t), jnp.float32, -1.0, 1.0) * bounds[None, :]
    w = w * jnp.triu(jnp.ones((t, t), jnp.float32))
    b = jax.random.uniform(kb, (t,), jnp.float32, -1.0, 1.0) * bounds
    return w.astype(dtype), b.astype(dtype)


def _init_conv(key, channel, k, dtype):
    kw, kb = jax.random.split(key)
    bound = 1.0 / float((channel * k) ** 0.5)
    w = jax.random.uniform(kw, (channel, channel, k), jnp.float32, -bound, bound)
    b = jax.random.uniform(kb, (channel,), jnp.float32, -bound, bound)
    return w.astype(dtype), b.astype(dtype)


def init_params(key, time_step, channel, scale_count=1, dtype=jnp.float32):
    params = {}
    keys = jax.random.split(key, 2 + 3 * scale_count)
    params["ln_gamma"] = (1.0 + 0.1 * jax.random.normal(keys[0], (channel, time_step))).astype(dtype)
    params["ln_beta"] = (0.1 * jax.random.normal(keys[1], (channel, time_step))).astype(dtype)
    idx = 2
    for i in range(scale_count):
        t_i = time_step // (2 ** i)
        params[f"w1t_{i}"], params[f"b1_{i}"] = _init_triu(keys[idx], t_i, dtype); idx += 1
        params[f"w2t_{i}"], params[f"b2_{i}"] = _init_triu(keys[idx], t_i, dtype); idx += 1
        if i >= 1:
            params[f"conv_w_{i}"], params[f"conv_b_{i}"] = _init_conv(keys[idx], channel, 2 ** i, dtype)
        idx += 1
    return params


def reference(x, params, *, scale_count=1):
    """Pure-JAX re-implementation of MultiScaleTimeMixer.forward."""
    bsz, t, c = x.shape
    xp = jnp.transpose(x, (0, 2, 1)).astype(jnp.float32)

    def hsw(z):
        return z * jnp.clip(z + 3.0, 0.0, 6.0) / 6.0

    mean = jnp.mean(xp, axis=(1, 2), keepdims=True)
    var = jnp.mean((xp - mean) ** 2, axis=(1, 2), keepdims=True)
    xn = (xp - mean) / jnp.sqrt(var + 1e-5)
    xn = xn * params["ln_gamma"] + params["ln_beta"]
    y = xn @ params["w1t_0"] + params["b1_0"]
    y = hsw(y)
    y = y @ params["w2t_0"] + params["b2_0"]
    outs = [y]
    for i in range(1, scale_count):
        k = 2 ** i
        to = (t - k) // k + 1
        w = params[f"conv_w_{i}"]
        b = params[f"conv_b_{i}"]
        pat = xp[:, :, : to * k].reshape(bsz, c, to, k)
        pat = jnp.transpose(pat, (0, 2, 1, 3)).reshape(bsz, to, c * k)
        conv = pat @ w.reshape(c, c * k).T + b
        z = jnp.transpose(conv, (0, 2, 1))
        z = z @ params[f"w1t_{i}"] + params[f"b1_{i}"]
        z = hsw(z)
        z = z @ params[f"w2t_{i}"] + params[f"b2_{i}"]
        outs.append(z)
    return jnp.concatenate(outs, axis=-1)


# ----------------------------------------------------------------------------
# demo / self-test
# ----------------------------------------------------------------------------
if __name__ == "__main__":
    batch, time_step, channel, scale_count = 4, 16, 16, 2   # T == C (torch LN constraint)

    key = jax.random.PRNGKey(0)
    kx, kp = jax.random.split(key)
    x = jax.random.normal(kx, (batch, time_step, channel), jnp.float32)
    params = init_params(kp, time_step, channel, scale_count)

    ref = reference(x, params, scale_count=scale_count)
    expected_t = sum(time_step // (2 ** i) for i in range(scale_count))

    # f32 compute path
    prep32 = prepare_params(params, time_step, channel, scale_count, jnp.float32)
    out = multi_scale_time_mixer(x, prep32, scale_count=scale_count,
                                 compute_dtype=jnp.float32)
    out = jax.block_until_ready(out)
    assert out.shape == (batch, channel, expected_t), out.shape
    assert jnp.allclose(out, ref, atol=1e-3, rtol=1e-3), \
        float(jnp.max(jnp.abs(out - ref)))

    # bf16 weights/activations with f32 accumulation (MXU fast path on v6e/v7x)
    prep16 = prepare_params(params, time_step, channel, scale_count, jnp.bfloat16)
    out16 = multi_scale_time_mixer(x, prep16, scale_count=scale_count,
                                   compute_dtype=jnp.bfloat16)
    out16 = jax.block_until_ready(out16)
    assert out16.shape == (batch, channel, expected_t)
    assert jnp.allclose(out16.astype(jnp.float32), ref, atol=1e-1, rtol=1e-1), \
        float(jnp.max(jnp.abs(out16.astype(jnp.float32) - ref)))

    print("KERNEL_OK")
</pallas_src>

<mosaic_0001>
module attributes {stable_mosaic.version = 11 : i64} {
  func.func @_conv_triu_kernel(%arg0: i32, %arg1: memref<1x32x128xf32, #tpu.memory_space<vmem>>, %arg2: memref<16x32xf32, #tpu.memory_space<vmem>>, %arg3: memref<16x1xf32, #tpu.memory_space<vmem>>, %arg4: memref<128x128xf32, #tpu.memory_space<vmem>>, %arg5: memref<1x128xf32, #tpu.memory_space<vmem>>, %arg6: memref<128x128xf32, #tpu.memory_space<vmem>>, %arg7: memref<1x128xf32, #tpu.memory_space<vmem>>, %arg8: memref<1x16x128xf32, #tpu.memory_space<vmem>>) attributes {dimension_semantics = [#tpu.dimension_semantics<parallel>], iteration_bounds = array<i64: 4>, scalar_prefetch = 0 : i64, scratch_operands = 0 : i64, tpu.core_type = #tpu.core_type<tc>, window_params = [{transform_indices = @transform_0, window_bounds = array<i64: 1, 32, 128>}, {pipeline_mode = #tpu.pipeline_mode<synchronous>, transform_indices = @transform_1, window_bounds = array<i64: 16, 32>}, {pipeline_mode = #tpu.pipeline_mode<synchronous>, transform_indices = @transform_2, window_bounds = array<i64: 16, 1>}, {pipeline_mode = #tpu.pipeline_mode<synchronous>, transform_indices = @transform_3, window_bounds = array<i64: 128, 128>}, {pipeline_mode = #tpu.pipeline_mode<synchronous>, transform_indices = @transform_4, window_bounds = array<i64: 1, 128>}, {pipeline_mode = #tpu.pipeline_mode<synchronous>, transform_indices = @transform_5, window_bounds = array<i64: 128, 128>}, {pipeline_mode = #tpu.pipeline_mode<synchronous>, transform_indices = @transform_6, window_bounds = array<i64: 1, 128>}, {transform_indices = @transform_7, window_bounds = array<i64: 1, 16, 128>}]} {
    %c0 = arith.constant 0 : index
    %c0_0 = arith.constant 0 : index
    %0 = vector.load %arg2[%c0, %c0_0] : memref<16x32xf32, #tpu.memory_space<vmem>>, vector<16x32xf32>
    %c0_1 = arith.constant 0 : index
    %c0_2 = arith.constant 0 : index
    %c0_3 = arith.constant 0 : index
    %1 = vector.load %arg1[%c0_1, %c0_2, %c0_3] : memref<1x32x128xf32, #tpu.memory_space<vmem>>, vector<1x32x128xf32>
    %2 = vector.shape_cast %1 : vector<1x32x128xf32> to vector<32x128xf32>
    %cst = arith.constant dense<0.000000e+00> : vector<16x128xf32>
    %3 = tpu.matmul %0, %2, %cst {dimension_numbers = #tpu.dot_dimension_numbers<[1], [0], [0], [1], [0, 0, 1, 1], [], []>} : vector<16x32xf32>, vector<32x128xf32>, vector<16x128xf32> -> vector<16x128xf32>
    %c0_4 = arith.constant 0 : index
    %c0_5 = arith.constant 0 : index
    %4 = vector.load %arg3[%c0_4, %c0_5] : memref<16x1xf32, #tpu.memory_space<vmem>>, vector<16x1xf32>
    %5 = vector.broadcast %4 : vector<16x1xf32> to vector<16x128xf32>
    %6 = arith.addf %3, %5 : vector<16x128xf32>
    %c0_6 = arith.constant 0 : index
    %c0_7 = arith.constant 0 : index
    %7 = vector.load %arg4[%c0_6, %c0_7] : memref<128x128xf32, #tpu.memory_space<vmem>>, vector<128x128xf32>
    %cst_8 = arith.constant dense<0.000000e+00> : vector<16x128xf32>
    %8 = tpu.matmul %6, %7, %cst_8 {dimension_numbers = #tpu.dot_dimension_numbers<[1], [0], [0], [1], [0, 0, 1, 1], [], []>} : vector<16x128xf32>, vector<128x128xf32>, vector<16x128xf32> -> vector<16x128xf32>
    %c0_9 = arith.constant 0 : index
    %c0_10 = arith.constant 0 : index
    %9 = vector.load %arg5[%c0_9, %c0_10] : memref<1x128xf32, #tpu.memory_space<vmem>>, vector<1x128xf32>
    %10 = vector.broadcast %9 : vector<1x128xf32> to vector<16x128xf32>
    %11 = arith.addf %8, %10 : vector<16x128xf32>
    %cst_11 = arith.constant 3.000000e+00 : f32
    %12 = vector.broadcast %cst_11 : f32 to vector<16x128xf32>
    %13 = arith.addf %11, %12 : vector<16x128xf32>
    %cst_12 = arith.constant 0.000000e+00 : f32
    %cst_13 = arith.constant 6.000000e+00 : f32
    %14 = vector.broadcast %cst_12 : f32 to vector<16x128xf32>
    %15 = arith.maximumf %14, %13 : vector<16x128xf32>
    %16 = vector.broadcast %cst_13 : f32 to vector<16x128xf32>
    %17 = arith.minimumf %16, %15 : vector<16x128xf32>
    %18 = arith.mulf %11, %17 : vector<16x128xf32>
    %cst_14 = arith.constant 0.166666672 : f32
    %19 = vector.broadcast %cst_14 : f32 to vector<16x128xf32>
    %20 = arith.mulf %18, %19 : vector<16x128xf32>
    %c0_15 = arith.constant 0 : index
    %c0_16 = arith.constant 0 : index
    %21 = vector.load %arg6[%c0_15, %c0_16] : memref<128x128xf32, #tpu.memory_space<vmem>>, vector<128x128xf32>
    %cst_17 = arith.constant dense<0.000000e+00> : vector<16x128xf32>
    %22 = tpu.matmul %20, %21, %cst_17 {dimension_numbers = #tpu.dot_dimension_numbers<[1], [0], [0], [1], [0, 0, 1, 1], [], []>} : vector<16x128xf32>, vector<128x128xf32>, vector<16x128xf32> -> vector<16x128xf32>
    %c0_18 = arith.constant 0 : index
    %c0_19 = arith.constant 0 : index
    %23 = vector.load %arg7[%c0_18, %c0_19] : memref<1x128xf32, #tpu.memory_space<vmem>>, vector<1x128xf32>
    %24 = vector.broadcast %23 : vector<1x128xf32> to vector<16x128xf32>
    %25 = arith.addf %22, %24 : vector<16x128xf32>
    %c0_20 = arith.constant 0 : index
    %c0_21 = arith.constant 0 : index
    %c0_22 = arith.constant 0 : index
    %26 = vector.load %arg8[%c0_20, %c0_21, %c0_22] : memref<1x16x128xf32, #tpu.memory_space<vmem>>, vector<1x16x128xf32>
    %27 = vector.shape_cast %26 : vector<1x16x128xf32> to vector<16x128xf32>
    %28 = vector.shape_cast %25 : vector<16x128xf32> to vector<1x16x128xf32>
    tpu.vector_store %arg8[%c0_20, %c0_21, %c0_22], %28 {strides = array<i32>} : memref<1x16x128xf32, #tpu.memory_space<vmem>>, vector<1x16x128xf32>,
    return
  }
  func.func @transform_0(%arg0: i32) -> (i32, i32, i32) {
    %c0_i32 = arith.constant 0 : i32
    %c0_i32_0 = arith.constant 0 : i32
    %c0_i32_1 = arith.constant 0 : i32
    return %arg0, %c0_i32, %c0_i32_0 : i32, i32, i32
  }
  func.func @transform_1(%arg0: i32) -> (i32, i32) {
    %c0_i32 = arith.constant 0 : i32
    %c0_i32_0 = arith.constant 0 : i32
    %c0_i32_1 = arith.constant 0 : i32
    return %c0_i32, %c0_i32_0 : i32, i32
  }
  func.func @transform_2(%arg0: i32) -> (i32, i32) {
    %c0_i32 = arith.constant 0 : i32
    %c0_i32_0 = arith.constant 0 : i32
    %c0_i32_1 = arith.constant 0 : i32
    return %c0_i32, %c0_i32_0 : i32, i32
  }
  func.func @transform_3(%arg0: i32) -> (i32, i32) {
    %c0_i32 = arith.constant 0 : i32
    %c0_i32_0 = arith.constant 0 : i32
    %c0_i32_1 = arith.constant 0 : i32
    return %c0_i32, %c0_i32_0 : i32, i32
  }
  func.func @transform_4(%arg0: i32) -> (i32, i32) {
    %c0_i32 = arith.constant 0 : i32
    %c0_i32_0 = arith.constant 0 : i32
    %c0_i32_1 = arith.constant 0 : i32
    return %c0_i32, %c0_i32_0 : i32, i32
  }
  func.func @transform_5(%arg0: i32) -> (i32, i32) {
    %c0_i32 = arith.constant 0 : i32
    %c0_i32_0 = arith.constant 0 : i32
    %c0_i32_1 = arith.constant 0 : i32
    return %c0_i32, %c0_i32_0 : i32, i32
  }
  func.func @transform_6(%arg0: i32) -> (i32, i32) {
    %c0_i32 = arith.constant 0 : i32
    %c0_i32_0 = arith.constant 0 : i32
    %c0_i32_1 = arith.constant 0 : i32
    return %c0_i32, %c0_i32_0 : i32, i32
  }
  func.func @transform_7(%arg0: i32) -> (i32, i32, i32) {
    %c0_i32 = arith.constant 0 : i32
    %c0_i32_0 = arith.constant 0 : i32
    %c0_i32_1 = arith.constant 0 : i32
    return %arg0, %c0_i32, %c0_i32_0 : i32, i32, i32
  }
}

module attributes {stable_mosaic.version = 11 : i64} {
  func.func @_ln_triu_kernel(%arg0: i32, %arg1: memref<1x16x128xf32, #tpu.memory_space<vmem>>, %arg2: memref<16x128xf32, #tpu.memory_space<vmem>>, %arg3: memref<16x128xf32, #tpu.memory_space<vmem>>, %arg4: memref<128x128xf32, #tpu.memory_space<vmem>>, %arg5: memref<1x128xf32, #tpu.memory_space<vmem>>, %arg6: memref<128x128xf32, #tpu.memory_space<vmem>>, %arg7: memref<1x128xf32, #tpu.memory_space<vmem>>, %arg8: memref<1x16x128xf32, #tpu.memory_space<vmem>>) attributes {dimension_semantics = [#tpu.dimension_semantics<parallel>], iteration_bounds = array<i64: 4>, scalar_prefetch = 0 : i64, scratch_operands = 0 : i64, tpu.core_type = #tpu.core_type<tc>, window_params = [{transform_indices = @transform_0, window_bounds = array<i64: 1, 16, 128>}, {pipeline_mode = #tpu.pipeline_mode<synchronous>, transform_indices = @transform_1, window_bounds = array<i64: 16, 128>}, {pipeline_mode = #tpu.pipeline_mode<synchronous>, transform_indices = @transform_2, window_bounds = array<i64: 16, 128>}, {pipeline_mode = #tpu.pipeline_mode<synchronous>, transform_indices = @transform_3, window_bounds = array<i64: 128, 128>}, {pipeline_mode = #tpu.pipeline_mode<synchronous>, transform_indices = @transform_4, window_bounds = array<i64: 1, 128>}, {pipeline_mode = #tpu.pipeline_mode<synchronous>, transform_indices = @transform_5, window_bounds = array<i64: 128, 128>}, {pipeline_mode = #tpu.pipeline_mode<synchronous>, transform_indices = @transform_6, window_bounds = array<i64: 1, 128>}, {transform_indices = @transform_7, window_bounds = array<i64: 1, 16, 128>}]} {
    %c0 = arith.constant 0 : index
    %c0_0 = arith.constant 0 : index
    %c0_1 = arith.constant 0 : index
    %0 = vector.load %arg1[%c0, %c0_0, %c0_1] : memref<1x16x128xf32, #tpu.memory_space<vmem>>, vector<1x16x128xf32>
    %1 = vector.shape_cast %0 : vector<1x16x128xf32> to vector<16x128xf32>
    %2 = tpu.iota {dimensions = array<i32: 1>} : vector<16x128xi32>
    %c16_i32 = arith.constant 16 : i32
    %3 = vector.broadcast %c16_i32 : i32 to vector<16x128xi32>
    %4 = arith.cmpi slt, %2, %3 : vector<16x128xi32>
    %5 = arith.extui %4 : vector<16x128xi1> to vector<16x128xi32>
    %6 = arith.sitofp %5 : vector<16x128xi32> to vector<16x128xf32>
    %7 = arith.mulf %1, %6 : vector<16x128xf32>
    %cst = arith.constant dense<0.000000e+00> : vector<16xf32>
    %8 = vector.multi_reduction <add>, %7, %cst [1] : vector<16x128xf32> to vector<16xf32>
    %9 = vector.shape_cast %8 : vector<16xf32> to vector<16x1xf32>
    %cst_2 = arith.constant dense<0.000000e+00> : vector<1xf32>
    %10 = vector.multi_reduction <add>, %9, %cst_2 [0] : vector<16x1xf32> to vector<1xf32>
    %11 = vector.shape_cast %10 : vector<1xf32> to vector<1x1xf32>
    %cst_3 = arith.constant 3.906250e-03 : f32
    %12 = vector.broadcast %cst_3 : f32 to vector<1x1xf32>
    %13 = arith.mulf %11, %12 : vector<1x1xf32>
    %14 = vector.broadcast %13 : vector<1x1xf32> to vector<16x128xf32>
    %15 = arith.subf %1, %14 : vector<16x128xf32>
    %16 = arith.mulf %15, %6 : vector<16x128xf32>
    %17 = arith.mulf %16, %16 : vector<16x128xf32>
    %cst_4 = arith.constant dense<0.000000e+00> : vector<16xf32>
    %18 = vector.multi_reduction <add>, %17, %cst_4 [1] : vector<16x128xf32> to vector<16xf32>
    %19 = vector.shape_cast %18 : vector<16xf32> to vector<16x1xf32>
    %cst_5 = arith.constant dense<0.000000e+00> : vector<1xf32>
    %20 = vector.multi_reduction <add>, %19, %cst_5 [0] : vector<16x1xf32> to vector<1xf32>
    %21 = vector.shape_cast %20 : vector<1xf32> to vector<1x1xf32>
    %cst_6 = arith.constant 3.906250e-03 : f32
    %22 = vector.broadcast %cst_6 : f32 to vector<1x1xf32>
    %23 = arith.mulf %21, %22 : vector<1x1xf32>
    %cst_7 = arith.constant 9.99999974E-6 : f32
    %24 = vector.broadcast %cst_7 : f32 to vector<1x1xf32>
    %25 = arith.addf %23, %24 : vector<1x1xf32>
    %26 = math.rsqrt %25 : vector<1x1xf32>
    %27 = vector.broadcast %13 : vector<1x1xf32> to vector<16x128xf32>
    %28 = arith.subf %1, %27 : vector<16x128xf32>
    %29 = vector.broadcast %26 : vector<1x1xf32> to vector<16x128xf32>
    %30 = arith.mulf %28, %29 : vector<16x128xf32>
    %c0_8 = arith.constant 0 : index
    %c0_9 = arith.constant 0 : index
    %31 = vector.load %arg2[%c0_8, %c0_9] : memref<16x128xf32, #tpu.memory_space<vmem>>, vector<16x128xf32>
    %32 = arith.mulf %30, %31 : vector<16x128xf32>
    %c0_10 = arith.constant 0 : index
    %c0_11 = arith.constant 0 : index
    %33 = vector.load %arg3[%c0_10, %c0_11] : memref<16x128xf32, #tpu.memory_space<vmem>>, vector<16x128xf32>
    %34 = arith.addf %32, %33 : vector<16x128xf32>
    %c0_12 = arith.constant 0 : index
    %c0_13 = arith.constant 0 : index
    %35 = vector.load %arg4[%c0_12, %c0_13] : memref<128x128xf32, #tpu.memory_space<vmem>>, vector<128x128xf32>
    %cst_14 = arith.constant dense<0.000000e+00> : vector<16x128xf32>
    %36 = tpu.matmul %34, %35, %cst_14 {dimension_numbers = #tpu.dot_dimension_numbers<[1], [0], [0], [1], [0, 0, 1, 1], [], []>} : vector<16x128xf32>, vector<128x128xf32>, vector<16x128xf32> -> vector<16x128xf32>
    %c0_15 = arith.constant 0 : index
    %c0_16 = arith.constant 0 : index
    %37 = vector.load %arg5[%c0_15, %c0_16] : memref<1x128xf32, #tpu.memory_space<vmem>>, vector<1x128xf32>
    %38 = vector.broadcast %37 : vector<1x128xf32> to vector<16x128xf32>
    %39 = arith.addf %36, %38 : vector<16x128xf32>
    %cst_17 = arith.constant 3.000000e+00 : f32
    %40 = vector.broadcast %cst_17 : f32 to vector<16x128xf32>
    %41 = arith.addf %39, %40 : vector<16x128xf32>
    %cst_18 = arith.constant 0.000000e+00 : f32
    %cst_19 = arith.constant 6.000000e+00 : f32
    %42 = vector.broadcast %cst_18 : f32 to vector<16x128xf32>
    %43 = arith.maximumf %42, %41 : vector<16x128xf32>
    %44 = vector.broadcast %cst_19 : f32 to vector<16x128xf32>
    %45 = arith.minimumf %44, %43 : vector<16x128xf32>
    %46 = arith.mulf %39, %45 : vector<16x128xf32>
    %cst_20 = arith.constant 0.166666672 : f32
    %47 = vector.broadcast %cst_20 : f32 to vector<16x128xf32>
    %48 = arith.mulf %46, %47 : vector<16x128xf32>
    %c0_21 = arith.constant 0 : index
    %c0_22 = arith.constant 0 : index
    %49 = vector.load %arg6[%c0_21, %c0_22] : memref<128x128xf32, #tpu.memory_space<vmem>>, vector<128x128xf32>
    %cst_23 = arith.constant dense<0.000000e+00> : vector<16x128xf32>
    %50 = tpu.matmul %48, %49, %cst_23 {dimension_numbers = #tpu.dot_dimension_numbers<[1], [0], [0], [1], [0, 0, 1, 1], [], []>} : vector<16x128xf32>, vector<128x128xf32>, vector<16x128xf32> -> vector<16x128xf32>
    %c0_24 = arith.constant 0 : index
    %c0_25 = arith.constant 0 : index
    %51 = vector.load %arg7[%c0_24, %c0_25] : memref<1x128xf32, #tpu.memory_space<vmem>>, vector<1x128xf32>
    %52 = vector.broadcast %51 : vector<1x128xf32> to vector<16x128xf32>
    %53 = arith.addf %50, %52 : vector<16x128xf32>
    %c0_26 = arith.constant 0 : index
    %c0_27 = arith.constant 0 : index
    %c0_28 = arith.constant 0 : index
    %54 = vector.load %arg8[%c0_26, %c0_27, %c0_28] : memref<1x16x128xf32, #tpu.memory_space<vmem>>, vector<1x16x128xf32>
    %55 = vector.shape_cast %54 : vector<1x16x128xf32> to vector<16x128xf32>
    %56 = vector.shape_cast %53 : vector<16x128xf32> to vector<1x16x128xf32>
    tpu.vector_store %arg8[%c0_26, %c0_27, %c0_28], %56 {strides = array<i32>} : memref<1x16x128xf32, #tpu.memory_space<vmem>>, vector<1x16x128xf32>,
    return
  }
  func.func @transform_0(%arg0: i32) -> (i32, i32, i32) {
    %c0_i32 = arith.constant 0 : i32
    %c0_i32_0 = arith.constant 0 : i32
    %c0_i32_1 = arith.constant 0 : i32
    return %arg0, %c0_i32, %c0_i32_0 : i32, i32, i32
  }
  func.func @transform_1(%arg0: i32) -> (i32, i32) {
    %c0_i32 = arith.constant 0 : i32
    %c0_i32_0 = arith.constant 0 : i32
    %c0_i32_1 = arith.constant 0 : i32
    return %c0_i32, %c0_i32_0 : i32, i32
  }
  func.func @transform_2(%arg0: i32) -> (i32, i32) {
    %c0_i32 = arith.constant 0 : i32
    %c0_i32_0 = arith.constant 0 : i32
    %c0_i32_1 = arith.constant 0 : i32
    return %c0_i32, %c0_i32_0 : i32, i32
  }
  func.func @transform_3(%arg0: i32) -> (i32, i32) {
    %c0_i32 = arith.constant 0 : i32
    %c0_i32_0 = arith.constant 0 : i32
    %c0_i32_1 = arith.constant 0 : i32
    return %c0_i32, %c0_i32_0 : i32, i32
  }
  func.func @transform_4(%arg0: i32) -> (i32, i32) {
    %c0_i32 = arith.constant 0 : i32
    %c0_i32_0 = arith.constant 0 : i32
    %c0_i32_1 = arith.constant 0 : i32
    return %c0_i32, %c0_i32_0 : i32, i32
  }
  func.func @transform_5(%arg0: i32) -> (i32, i32) {
    %c0_i32 = arith.constant 0 : i32
    %c0_i32_0 = arith.constant 0 : i32
    %c0_i32_1 = arith.constant 0 : i32
    return %c0_i32, %c0_i32_0 : i32, i32
  }
  func.func @transform_6(%arg0: i32) -> (i32, i32) {
    %c0_i32 = arith.constant 0 : i32
    %c0_i32_0 = arith.constant 0 : i32
    %c0_i32_1 = arith.constant 0 : i32
    return %c0_i32, %c0_i32_0 : i32, i32
  }
  func.func @transform_7(%arg0: i32) -> (i32, i32, i32) {
    %c0_i32 = arith.constant 0 : i32
    %c0_i32_0 = arith.constant 0 : i32
    %c0_i32_1 = arith.constant 0 : i32
    return %arg0, %c0_i32, %c0_i32_0 : i32, i32, i32
  }
}

</mosaic_0001>

<llo_original>
// kernel: multi_scale_time_mixer.3
$region0: #{multi_scale_time_mixer.3}
  #allocation0 [shape = 'u32[]', space=smem, size = 0x4, offset = 0x4, fixed_abs, tag = 'smem constant byte address 0x4 - core index']
  #allocation1 [shape = 'u32[144,128]{1,0:T(1,128)}', space=vmem, size = 0x12000, scoped, tag = 'internal scratch']
  %s0 = inlined_call_operand.vmem [shape: f32[4,32,128], index: 0, kind: input, shape index: {}]
  %s1 = inlined_call_operand.vmem [shape: f32[16,32], index: 1, kind: input, shape index: {}]
  %s2 = inlined_call_operand.vmem [shape: f32[16,1], index: 2, kind: input, shape index: {}]
  %s3 = inlined_call_operand.vmem [shape: f32[128,128], index: 3, kind: input, shape index: {}]
  %s4 = inlined_call_operand.vmem [shape: f32[1,128], index: 4, kind: input, shape index: {}]
  %s5 = inlined_call_operand.vmem [shape: f32[128,128], index: 5, kind: input, shape index: {}]
  %s6 = inlined_call_operand.vmem [shape: f32[1,128], index: 6, kind: input, shape index: {}]
  %s7 = inlined_call_operand.vmem [shape: f32[4,16,128], index: 7, kind: output, shape index: {}]
  %s8 = sld [smem:[#allocation0]]
  $region61: #{multi_scale_time_mixer.3} parent=0
    _
  %s10 = ssub.s32 1, %s8
  %s11 = scalar_select 0, %s10, %s8
  loop: start=0, step=1, limit=6
  $region2: #{multi_scale_time_mixer.3} parent=0 // loop_pre_header
    _
  $region3: #{multi_scale_time_mixer.3} parent=0 // loop_header
    %s13 = sphi 0, %s17
    %p14 = scmp.ge.s32.totalorder %s13, 6
    %s23 = sphi 0, %s25
    %s26 = sphi 0, %s23
    %s27 = sphi 0, %s26
    %s43 = sphi 0, %s27
    %s47 = sphi 0, %s47
    %s49 = sphi 0, %s47
    %s50 = sphi 0, %s49
    %s64 = sphi 0, %s50
    %s68 = sphi 0, %s68
    %s70 = sphi 0, %s68
    %s71 = sphi 0, %s70
    %s85 = sphi 0, %s71
    %s89 = sphi 0, %s89
    %s91 = sphi 0, %s89
    %s92 = sphi 0, %s91
    %s106 = sphi 0, %s92
    %s110 = sphi 0, %s110
    %s112 = sphi 0, %s110
    %s113 = sphi 0, %s112
    %s127 = sphi 0, %s113
    %s131 = sphi 0, %s131
    %s133 = sphi 0, %s131
    %s134 = sphi 0, %s133
    %s148 = sphi 0, %s134
    %s152 = sphi 0, %s152
    %s154 = sphi 0, %s152
    %s155 = sphi 0, %s154
    %s169 = sphi 0, %s155
    %s175 = sphi 0, %s177
    %s178 = sphi 0, %s175
    %s179 = sphi 0, %s178
    %s195 = sphi 0, %s179
  $region4: #{multi_scale_time_mixer.3} parent=0 // loop_header_branch
    %16 = sbr.rel (%p14) target = $region8
  $region5: #{multi_scale_time_mixer.3} parent=0 // loop_body
    %s18 = ssub.s32 %s13, 1
    %s19 = ssub.s32 %s13, 2
    %s20 = sadd.s32 %s13, 1
    %s21 = ssub.s32 %s13, %s20
    %p22 = scmp.eq.s32.totalorder %s21, 0
    %s24 = sadd.s32 %s23, 1
    %s25 = scalar_select %p22, %s23, %s24
    %p28 = pneg %p22
    %p29 = scmp.eq.s32.totalorder %s13, 3
    %p30 = por %p28, %p29
    %p31 = scmp.ne.s32.totalorder %s23, %s26
    %p32 = scmp.eq.s32.totalorder %s13, 0
    %p33 = por %p31, %p32
    %p34 = scmp.ne.s32.totalorder %s23, %s26
    %p35 = scmp.eq.s32.totalorder %s18, 3
    %p36 = por %p34, %p35
    %p37 = scmp.ne.s32.totalorder %s26, %s27
    %p38 = scmp.eq.s32.totalorder %s18, 0
    %p39 = por %p37, %p38
    %p40 = scmp.ne.s32.totalorder %s26, %s27
    %p41 = scmp.eq.s32.totalorder %s19, 3
    %p42 = por %p40, %p41
    %p44 = scmp.ne.s32.totalorder %s27, %s43
    %p45 = scmp.eq.s32.totalorder %s19, 0
    %p46 = por %p44, %p45
    %s48 = sadd.s32 %s47, 1
    %p51 = scmp.eq.s32.totalorder %s13, 3
    %p52 = scmp.ne.s32.totalorder %s47, %s49
    %p53 = scmp.eq.s32.totalorder %s13, 0
    %p54 = por %p52, %p53
    %p55 = scmp.ne.s32.totalorder %s47, %s49
    %p56 = scmp.eq.s32.totalorder %s18, 3
    %p57 = por %p55, %p56
    %p58 = scmp.ne.s32.totalorder %s49, %s50
    %p59 = scmp.eq.s32.totalorder %s18, 0
    %p60 = por %p58, %p59
    %p61 = scmp.ne.s32.totalorder %s49, %s50
    %p62 = scmp.eq.s32.totalorder %s19, 3
    %p63 = por %p61, %p62
    %p65 = scmp.ne.s32.totalorder %s50, %s64
    %p66 = scmp.eq.s32.totalorder %s19, 0
    %p67 = por %p65, %p66
    %s69 = sadd.s32 %s68, 1
    %p72 = scmp.eq.s32.totalorder %s13, 3
    %p73 = scmp.ne.s32.totalorder %s68, %s70
    %p74 = scmp.eq.s32.totalorder %s13, 0
    %p75 = por %p73, %p74
    %p76 = scmp.ne.s32.totalorder %s68, %s70
    %p77 = scmp.eq.s32.totalorder %s18, 3
    %p78 = por %p76, %p77
    %p79 = scmp.ne.s32.totalorder %s70, %s71
    %p80 = scmp.eq.s32.totalorder %s18, 0
    %p81 = por %p79, %p80
    %p82 = scmp.ne.s32.totalorder %s70, %s71
    %p83 = scmp.eq.s32.totalorder %s19, 3
    %p84 = por %p82, %p83
    %p86 = scmp.ne.s32.totalorder %s71, %s85
    %p87 = scmp.eq.s32.totalorder %s19, 0
    %p88 = por %p86, %p87
    %s90 = sadd.s32 %s89, 1
    %p93 = scmp.eq.s32.totalorder %s13, 3
    %p94 = scmp.ne.s32.totalorder %s89, %s91
    %p95 = scmp.eq.s32.totalorder %s13, 0
    %p96 = por %p94, %p95
    %p97 = scmp.ne.s32.totalorder %s89, %s91
    %p98 = scmp.eq.s32.totalorder %s18, 3
    %p99 = por %p97, %p98
    %p100 = scmp.ne.s32.totalorder %s91, %s92
    %p101 = scmp.eq.s32.totalorder %s18, 0
    %p102 = por %p100, %p101
    %p103 = scmp.ne.s32.totalorder %s91, %s92
    %p104 = scmp.eq.s32.totalorder %s19, 3
    %p105 = por %p103, %p104
    %p107 = scmp.ne.s32.totalorder %s92, %s106
    %p108 = scmp.eq.s32.totalorder %s19, 0
    %p109 = por %p107, %p108
    %s111 = sadd.s32 %s110, 1
    %p114 = scmp.eq.s32.totalorder %s13, 3
    %p115 = scmp.ne.s32.totalorder %s110, %s112
    %p116 = scmp.eq.s32.totalorder %s13, 0
    %p117 = por %p115, %p116
    %p118 = scmp.ne.s32.totalorder %s110, %s112
    %p119 = scmp.eq.s32.totalorder %s18, 3
    %p120 = por %p118, %p119
    %p121 = scmp.ne.s32.totalorder %s112, %s113
    %p122 = scmp.eq.s32.totalorder %s18, 0
    %p123 = por %p121, %p122
    %p124 = scmp.ne.s32.totalorder %s112, %s113
    %p125 = scmp.eq.s32.totalorder %s19, 3
    %p126 = por %p124, %p125
    %p128 = scmp.ne.s32.totalorder %s113, %s127
    %p129 = scmp.eq.s32.totalorder %s19, 0
    %p130 = por %p128, %p129
    %s132 = sadd.s32 %s131, 1
    %p135 = scmp.eq.s32.totalorder %s13, 3
    %p136 = scmp.ne.s32.totalorder %s131, %s133
    %p137 = scmp.eq.s32.totalorder %s13, 0
    %p138 = por %p136, %p137
    %p139 = scmp.ne.s32.totalorder %s131, %s133
    %p140 = scmp.eq.s32.totalorder %s18, 3
    %p141 = por %p139, %p140
    %p142 = scmp.ne.s32.totalorder %s133, %s134
    %p143 = scmp.eq.s32.totalorder %s18, 0
    %p144 = por %p142, %p143
    %p145 = scmp.ne.s32.totalorder %s133, %s134
    %p146 = scmp.eq.s32.totalorder %s19, 3
    %p147 = por %p145, %p146
    %p149 = scmp.ne.s32.totalorder %s134, %s148
    %p150 = scmp.eq.s32.totalorder %s19, 0
    %p151 = por %p149, %p150
    %s153 = sadd.s32 %s152, 1
    %p156 = scmp.eq.s32.totalorder %s13, 3
    %p157 = scmp.ne.s32.totalorder %s152, %s154
    %p158 = scmp.eq.s32.totalorder %s13, 0
    %p159 = por %p157, %p158
    %p160 = scmp.ne.s32.totalorder %s152, %s154
    %p161 = scmp.eq.s32.totalorder %s18, 3
    %p162 = por %p160, %p161
    %p163 = scmp.ne.s32.totalorder %s154, %s155
    %p164 = scmp.eq.s32.totalorder %s18, 0
    %p165 = por %p163, %p164
    %p166 = scmp.ne.s32.totalorder %s154, %s155
    %p167 = scmp.eq.s32.totalorder %s19, 3
    %p168 = por %p166, %p167
    %p170 = scmp.ne.s32.totalorder %s155, %s169
    %p171 = scmp.eq.s32.totalorder %s19, 0
    %p172 = por %p170, %p171
    %s173 = ssub.s32 %s13, %s20
    %p174 = scmp.eq.s32.totalorder %s173, 0
    %s176 = sadd.s32 %s175, 1
    %s177 = scalar_select %p174, %s175, %s176
    %p180 = pneg %p174
    %p181 = scmp.eq.s32.totalorder %s13, 3
    %p182 = por %p180, %p181
    %p183 = scmp.ne.s32.totalorder %s175, %s178
    %p184 = scmp.eq.s32.totalorder %s13, 0
    %p185 = por %p183, %p184
    %p186 = scmp.ne.s32.totalorder %s175, %s178
    %p187 = scmp.eq.s32.totalorder %s18, 3
    %p188 = por %p186, %p187
    %p189 = scmp.ne.s32.totalorder %s178, %s179
    %p190 = scmp.eq.s32.totalorder %s18, 0
    %p191 = por %p189, %p190
    %p192 = scmp.ne.s32.totalorder %s178, %s179
    %p193 = scmp.eq.s32.totalorder %s19, 3
    %p194 = por %p192, %p193
    %p196 = scmp.ne.s32.totalorder %s179, %s195
    %p197 = scmp.eq.s32.totalorder %s19, 0
    %p198 = por %p196, %p197
    %p199 = scmp.le.s32.totalorder 1, %s13
    %p200 = scmp.lt.s32.totalorder %s13, 5
    %p201 = pnand %p199, %p200
    %p202 = pneg %p201
    // Predicated region
    $region9: #{multi_scale_time_mixer.3} parent=5 // pred_check
      _
    $region10: #{multi_scale_time_mixer.3} parent=5 // pred_check_branch
      %204 = sbr.rel (%p201) target = $region12
    $region11: #{multi_scale_time_mixer.3} parent=5 // pred_region
      %s205 = ssub.s32 %s13, 1
      // Predicated region
      $region13: #{multi_scale_time_mixer.3} parent=11 // pred_check
        %p206 = pneg %p60
      $region14: #{multi_scale_time_mixer.3} parent=11 // pred_check_branch
        %208 = sbr.rel (%p206) target = $region16
      $region15: #{multi_scale_time_mixer.3} parent=11 // pred_region
        _
      $region16: #{multi_scale_time_mixer.3} parent=11 // pred_fallthru
        _
      // Predicated region
      $region17: #{multi_scale_time_mixer.3} parent=11 // pred_check
        %p209 = pneg %p81
      $region18: #{multi_scale_time_mixer.3} parent=11 // pred_check_branch
        %211 = sbr.rel (%p209) target = $region20
      $region19: #{multi_scale_time_mixer.3} parent=11 // pred_region
        _
      $region20: #{multi_scale_time_mixer.3} parent=11 // pred_fallthru
        _
      // Predicated region
      $region21: #{multi_scale_time_mixer.3} parent=11 // pred_check
        %p212 = pneg %p102
      $region22: #{multi_scale_time_mixer.3} parent=11 // pred_check_branch
        %214 = sbr.rel (%p212) target = $region24
      $region23: #{multi_scale_time_mixer.3} parent=11 // pred_region
        _
      $region24: #{multi_scale_time_mixer.3} parent=11 // pred_fallthru
        _
      // Predicated region
      $region25: #{multi_scale_time_mixer.3} parent=11 // pred_check
        %p215 = pneg %p123
      $region26: #{multi_scale_time_mixer.3} parent=11 // pred_check_branch
        %217 = sbr.rel (%p215) target = $region28
      $region27: #{multi_scale_time_mixer.3} parent=11 // pred_region
        _
      $region28: #{multi_scale_time_mixer.3} parent=11 // pred_fallthru
        _
      // Predicated region
      $region29: #{multi_scale_time_mixer.3} parent=11 // pred_check
        %p218 = pneg %p144
      $region30: #{multi_scale_time_mixer.3} parent=11 // pred_check_branch
        %220 = sbr.rel (%p218) target = $region32
      $region31: #{multi_scale_time_mixer.3} parent=11 // pred_region
        _
      $region32: #{multi_scale_time_mixer.3} parent=11 // pred_fallthru
        _
      // Predicated region
      $region33: #{multi_scale_time_mixer.3} parent=11 // pred_check
        %p221 = pneg %p165
      $region34: #{multi_scale_time_mixer.3} parent=11 // pred_check_branch
        %223 = sbr.rel (%p221) target = $region36
      $region35: #{multi_scale_time_mixer.3} parent=11 // pred_region
        _
      $region36: #{multi_scale_time_mixer.3} parent=11 // pred_fallthru
        _
    $region12: #{multi_scale_time_mixer.3} parent=5 // pred_fallthru
      _
    %p224 = scmp.lt.s32.totalorder %s13, 4
    // Predicated region
    $region37: #{multi_scale_time_mixer.3} parent=5 // pred_check
      %p225 = pneg %p224
    $region38: #{multi_scale_time_mixer.3} parent=5 // pred_check_branch
      %227 = sbr.rel (%p225) target = $region40
    $region39: #{multi_scale_time_mixer.3} parent=5 // pred_region
      // Predicated region
      $region41: #{multi_scale_time_mixer.3} parent=39 // pred_check
        %p228 = pneg %p33
      $region42: #{multi_scale_time_mixer.3} parent=39 // pred_check_branch
        %230 = sbr.rel (%p228) target = $region44
      $region43: #{multi_scale_time_mixer.3} parent=39 // pred_region
        %p231 = scmp.lt.s32.totalorder %s13, 3
        %s232 = scalar_select %p231, %s13, 3
        %s233 = smul.addr %s232, 4
        %s234 = smul.addr %s233, 8
        %s235 = scalar_lea.vmem %s0, %s234
      $region44: #{multi_scale_time_mixer.3} parent=39 // pred_fallthru
        _
    $region40: #{multi_scale_time_mixer.3} parent=5 // pred_fallthru
      _
    %p236 = scmp.le.s32.totalorder 1, %s13
    %p237 = scmp.lt.s32.totalorder %s13, 5
    %p238 = pnand %p236, %p237
    %p239 = pneg %p238
    // Predicated region
    $region45: #{multi_scale_time_mixer.3} parent=5 // pred_check
      _
    $region46: #{multi_scale_time_mixer.3} parent=5 // pred_check_branch
      %241 = sbr.rel (%p238) target = $region48
    $region47: #{multi_scale_time_mixer.3} parent=5 // pred_region
      %s242 = ssub.s32 %s13, 1
      %p243 = scmp.lt.s32.totalorder %s18, 3
      %s244 = scalar_select %p243, %s18, 3
      %s245 = smul.addr %s244, 4
      %s246 = smul.addr %s245, 8
      %s247 = scalar_lea.vmem %s0, %s246
      %p248 = pneg %p39
      %p249 = pneg %p36
      %p250 = pneg %p60
      %p251 = pneg %p57
      %p252 = pneg %p81
      %p253 = pneg %p78
      %p254 = pneg %p102
      %p255 = pneg %p99
      %p256 = pneg %p123
      %p257 = pneg %p120
      %p258 = pneg %p144
      %p259 = pneg %p141
      %p260 = pneg %p165
      %p261 = pneg %p162
      %p262 = pneg %p191
      %p263 = pneg %p188
      %p264 = scmp.lt.s32.totalorder %s18, 3
      %s265 = scalar_select %p264, %s18, 3
      %s266 = smul.addr %s265, 2
      %s267 = smul.addr %s266, 8
      %s268 = scalar_lea.vmem %s7, %s267
      %p269 = scmp.lt.s32.totalorder %s18, 3
      %s270 = scalar_select %p269, %s18, 3
      %s271 = smul.addr %s270, 4
      %s272 = smul.addr %s271, 8
      %s273 = scalar_lea.vmem %s0, %s272
      %p274 = scmp.lt.s32.totalorder %s18, 3
      %s275 = scalar_select %p274, %s18, 3
      %s276 = smul.addr %s275, 2
      %s277 = smul.addr %s276, 8
      %s278 = scalar_lea.vmem %s7, %s277
      %v279 = vld [vmem:[%s1] sm:$0xff]
      %v280 = vld [vmem:[%s1 + $0x8] sm:$0xff]
      %v281 = vld [vmem:[%s273] sm:$0xff]
      %v282 = vld [vmem:[%s273 + $0x8] sm:$0xff]
      %v283 = vld [vmem:[%s273 + $0x10] sm:$0xff]
      %v284 = vld [vmem:[%s273 + $0x18] sm:$0xff]
      %v285 = vld [vmem:[%s2] sm:$0xff]
      %v286 = vld [vmem:[%s2 + $0x8] sm:$0xff]
      %288 = vset.pattern.permute.xlu0 0
      %289 = vperm.xlu0 %288, %v285
      %v290 = vpop.permute.xlu0 %289
      %293 = vset.pattern.permute.xlu0 0
      %294 = vperm.xlu0 %293, %v286
      %v295 = vpop.permute.xlu0 %294
      %vm297 = vcmask 261120
      %v299 = vsel %vm297, %v279, 0
      %v302 = vsel %vm297, %v280, 0
      %304 = vmatprep.subr.mxu0 0.0
      %305 = vmatpush1.msra.mxu0 %v281
      %306 = vmatprep.subr.mxu0 0.0
      %307 = vmatpush1.msra.mxu0 %v282
      %308 = vmatprep.subr.mxu0 0.0
      %309 = vmatpush1.msra.mxu0 %v283
      %310 = vmatprep.subr.mxu0 0.0
      %311 = vmatpush1.msra.mxu0 %v284
      %312 = vmatprep.subr.mxu0 0.0
      %313 = vmatpush1.msra.mxu0 0.0
      %314 = vmatprep.subr.mxu0 0.0
      %315 = vmatpush1.msra.mxu0 0.0
      %316 = vmatprep.subr.mxu0 0.0
      %317 = vmatpush1.msra.mxu0 0.0
      %318 = vmatprep.subr.mxu0 0.0
      %319 = vmatpush1.msra.mxu0 0.0
      %320 = vmatprep.subr.mxu0 0.0
      %321 = vmatpush1.msra.mxu0 0.0
      %322 = vmatprep.subr.mxu0 0.0
      %323 = vmatpush1.msra.mxu0 0.0
      %324 = vmatprep.subr.mxu0 0.0
      %325 = vmatpush1.msra.mxu0 0.0
      %326 = vmatprep.subr.mxu0 0.0
      %327 = vmatpush1.msra.mxu0 0.0
      %328 = vmatprep.subr.mxu0 0.0
      %329 = vmatpush1.msra.mxu0 0.0
      %330 = vmatprep.subr.mxu0 0.0
      %331 = vmatpush1.msra.mxu0 0.0
      %332 = vmatprep.subr.mxu0 0.0
      %333 = vmatpush1.msra.mxu0 0.0
      %334 = vmatprep.subr.mxu0 0.0
      %335 = vmatpush1.msra.mxu0 0.0
      %336 = vmatprep.subr.mxu0 0.0
      %337 = vmatpush1.msra.mxu0 0.0
      %338 = vmatprep.subr.mxu0 0.0
      %339 = vmatpush1.msra.mxu0 0.0
      %340 = vmatprep.subr.mxu0 0.0
      %341 = vmatpush1.msra.mxu0 0.0
      %342 = vmatprep.subr.mxu0 0.0
      %343 = vmatpush1.msra.mxu0 0.0
      %344 = vmatprep.subr.mxu0 0.0
      %345 = vmatpush1.msra.mxu0 0.0
      %346 = vmatprep.subr.mxu0 0.0
      %347 = vmatpush1.msra.mxu0 0.0
      %348 = vmatprep.subr.mxu0 0.0
      %349 = vmatpush1.msra.mxu0 0.0
      %350 = vmatprep.subr.mxu0 0.0
      %351 = vmatpush1.msra.mxu0 0.0
      %352 = vmatprep.subr.mxu0 0.0
      %353 = vmatpush1.msra.mxu0 0.0
      %354 = vmatprep.subr.mxu0 0.0
      %355 = vmatpush1.msra.mxu0 0.0
      %356 = vmatprep.subr.mxu0 0.0
      %357 = vmatpush1.msra.mxu0 0.0
      %358 = vmatprep.subr.mxu0 0.0
      %359 = vmatpush1.msra.mxu0 0.0
      %360 = vmatprep.subr.mxu0 0.0
      %361 = vmatpush1.msra.mxu0 0.0
      %362 = vmatprep.subr.mxu0 0.0
      %363 = vmatpush1.msra.mxu0 0.0
      %364 = vmatprep.subr.mxu0 0.0
      %365 = vmatpush1.msra.mxu0 0.0
      %366 = vmatprep.subr.mxu0 0.0
      %367 = vmatpush1.msra.mxu0 0.0
      %368 = vmatprep.mubr.f32.mxu0 0.0
      %369 = vmatmul.mubr.f32.gmra.mrb[0].mxu0 %v299
      %v370 = vpop.f32.mrb[0].mxu0
      %v371 = vadd.f32 %v290, %v370
      %v372 = vpop.f32.mrb[0].mxu0
      %373 = vmatprep.mubr.f32.mxu0 0.0
      %374 = vmatmul.mubr.f32.gmra.mrb[0].mxu0 %v302
      %v375 = vpop.f32.mrb[0].mxu0
      %v376 = vadd.f32 %v295, %v375
      %v377 = vpop.f32.mrb[0].mxu0
      %378 = vdwg.mxu0
      %v379 = vld [vmem:[%s3] sm:$0xff]
      %v380 = vld [vmem:[%s3 + $0x8] sm:$0xff]
      %v381 = vld [vmem:[%s3 + $0x10] sm:$0xff]
      %v382 = vld [vmem:[%s3 + $0x18] sm:$0xff]
      %v383 = vld [vmem:[%s3 + $0x20] sm:$0xff]
      %v384 = vld [vmem:[%s3 + $0x28] sm:$0xff]
      %v385 = vld [vmem:[%s3 + $0x30] sm:$0xff]
      %v386 = vld [vmem:[%s3 + $0x38] sm:$0xff]
      %v387 = vld [vmem:[%s3 + $0x40] sm:$0xff]
      %v388 = vld [vmem:[%s3 + $0x48] sm:$0xff]
      %v389 = vld [vmem:[%s3 + $0x50] sm:$0xff]
      %v390 = vld [vmem:[%s3 + $0x58] sm:$0xff]
      %v391 = vld [vmem:[%s3 + $0x60] sm:$0xff]
      %v392 = vld [vmem:[%s3 + $0x68] sm:$0xff]
      %v393 = vld [vmem:[%s3 + $0x70] sm:$0xff]
      %v394 = vld [vmem:[%s3 + $0x78] sm:$0xff]
      %v395 = vld [vmem:[%s4] sm:$0x1]
      %v397 = vlaneseq
      %v398 = vshrl.u32 %v397, 7
      %v399 = vsub.s32 0, %v398
      %v400 = vrot.slane %v395, %v399
      %402 = vmatprep.subr.mxu0 0.0
      %403 = vmatpush1.msra.mxu0 %v379
      %404 = vmatprep.subr.mxu0 0.0
      %405 = vmatpush1.msra.mxu0 %v380
      %406 = vmatprep.subr.mxu0 0.0
      %407 = vmatpush1.msra.mxu0 %v381
      %408 = vmatprep.subr.mxu0 0.0
      %409 = vmatpush1.msra.mxu0 %v382
      %410 = vmatprep.subr.mxu0 0.0
      %411 = vmatpush1.msra.mxu0 %v383
      %412 = vmatprep.subr.mxu0 0.0
      %413 = vmatpush1.msra.mxu0 %v384
      %414 = vmatprep.subr.mxu0 0.0
      %415 = vmatpush1.msra.mxu0 %v385
      %416 = vmatprep.subr.mxu0 0.0
      %417 = vmatpush1.msra.mxu0 %v386
      %418 = vmatprep.subr.mxu0 0.0
      %419 = vmatpush1.msra.mxu0 %v387
      %420 = vmatprep.subr.mxu0 0.0
      %421 = vmatpush1.msra.mxu0 %v388
      %422 = vmatprep.subr.mxu0 0.0
      %423 = vmatpush1.msra.mxu0 %v389
      %424 = vmatprep.subr.mxu0 0.0
      %425 = vmatpush1.msra.mxu0 %v390
      %426 = vmatprep.subr.mxu0 0.0
      %427 = vmatpush1.msra.mxu0 %v391
      %428 = vmatprep.subr.mxu0 0.0
      %429 = vmatpush1.msra.mxu0 %v392
      %430 = vmatprep.subr.mxu0 0.0
      %431 = vmatpush1.msra.mxu0 %v393
      %432 = vmatprep.subr.mxu0 0.0
      %433 = vmatpush1.msra.mxu0 %v394
      %434 = vmatprep.subr.mxu0 0.0
      %435 = vmatpush1.msra.mxu0 0.0
      %436 = vmatprep.subr.mxu0 0.0
      %437 = vmatpush1.msra.mxu0 0.0
      %438 = vmatprep.subr.mxu0 0.0
      %439 = vmatpush1.msra.mxu0 0.0
      %440 = vmatprep.subr.mxu0 0.0
      %441 = vmatpush1.msra.mxu0 0.0
      %442 = vmatprep.subr.mxu0 0.0
      %443 = vmatpush1.msra.mxu0 0.0
      %444 = vmatprep.subr.mxu0 0.0
      %445 = vmatpush1.msra.mxu0 0.0
      %446 = vmatprep.subr.mxu0 0.0
      %447 = vmatpush1.msra.mxu0 0.0
      %448 = vmatprep.subr.mxu0 0.0
      %449 = vmatpush1.msra.mxu0 0.0
      %450 = vmatprep.subr.mxu0 0.0
      %451 = vmatpush1.msra.mxu0 0.0
      %452 = vmatprep.subr.mxu0 0.0
      %453 = vmatpush1.msra.mxu0 0.0
      %454 = vmatprep.subr.mxu0 0.0
      %455 = vmatpush1.msra.mxu0 0.0
      %456 = vmatprep.subr.mxu0 0.0
      %457 = vmatpush1.msra.mxu0 0.0
      %458 = vmatprep.subr.mxu0 0.0
      %459 = vmatpush1.msra.mxu0 0.0
      %460 = vmatprep.subr.mxu0 0.0
      %461 = vmatpush1.msra.mxu0 0.0
      %462 = vmatprep.subr.mxu0 0.0
      %463 = vmatpush1.msra.mxu0 0.0
      %464 = vmatprep.subr.mxu0 0.0
      %465 = vmatpush1.msra.mxu0 0.0
      %466 = vmatprep.mubr.f32.mxu0 0.0
      %467 = vmatmul.mubr.f32.gmra.mrb[0].mxu0 %v371
      %v468 = vpop.f32.mrb[0].mxu0
      %v469 = vadd.f32 %v400, %v468
      %v470 = vpop.f32.mrb[0].mxu0
      %471 = vmatprep.mubr.f32.mxu0 0.0
      %472 = vmatmul.mubr.f32.gmra.mrb[0].mxu0 %v376
      %v473 = vpop.f32.mrb[0].mxu0
      %v474 = vadd.f32 %v400, %v473
      %v475 = vpop.f32.mrb[0].mxu0
      %476 = vdwg.mxu0
      %v477 = vadd.f32 %v469, 3.0
      %v478 = vadd.f32 %v474, 3.0
      %v479 = vmax.f32 %v477, 0.0
      %v480 = vmax.f32 %v478, 0.0
      %v481 = vmin.f32 %v479, 6.0
      %v482 = vmin.f32 %v480, 6.0
      %v483 = vmul.f32 %v469, %v481
      %v484 = vmul.f32 %v474, %v482
      %v485 = vmul.f32 %v483, 0.16666667
      %v486 = vmul.f32 %v484, 0.16666667
      %v487 = vld [vmem:[%s5] sm:$0xff]
      %v488 = vld [vmem:[%s5 + $0x8] sm:$0xff]
      %v489 = vld [vmem:[%s5 + $0x10] sm:$0xff]
      %v490 = vld [vmem:[%s5 + $0x18] sm:$0xff]
      %v491 = vld [vmem:[%s5 + $0x20] sm:$0xff]
      %v492 = vld [vmem:[%s5 + $0x28] sm:$0xff]
      %v493 = vld [vmem:[%s5 + $0x30] sm:$0xff]
      %v494 = vld [vmem:[%s5 + $0x38] sm:$0xff]
      %v495 = vld [vmem:[%s5 + $0x40] sm:$0xff]
      %v496 = vld [vmem:[%s5 + $0x48] sm:$0xff]
      %v497 = vld [vmem:[%s5 + $0x50] sm:$0xff]
      %v498 = vld [vmem:[%s5 + $0x58] sm:$0xff]
      %v499 = vld [vmem:[%s5 + $0x60] sm:$0xff]
      %v500 = vld [vmem:[%s5 + $0x68] sm:$0xff]
      %v501 = vld [vmem:[%s5 + $0x70] sm:$0xff]
      %v502 = vld [vmem:[%s5 + $0x78] sm:$0xff]
      %v503 = vld [vmem:[%s6] sm:$0x1]
      %v505 = vlaneseq
      %v506 = vshrl.u32 %v505, 7
      %v507 = vsub.s32 0, %v506
      %v508 = vrot.slane %v503, %v507
      %510 = vmatprep.subr.mxu0 0.0
      %511 = vmatpush1.msra.mxu0 %v487
      %512 = vmatprep.subr.mxu0 0.0
      %513 = vmatpush1.msra.mxu0 %v488
      %514 = vmatprep.subr.mxu0 0.0
      %515 = vmatpush1.msra.mxu0 %v489
      %516 = vmatprep.subr.mxu0 0.0
      %517 = vmatpush1.msra.mxu0 %v490
      %518 = vmatprep.subr.mxu0 0.0
      %519 = vmatpush1.msra.mxu0 %v491
      %520 = vmatprep.subr.mxu0 0.0
      %521 = vmatpush1.msra.mxu0 %v492
      %522 = vmatprep.subr.mxu0 0.0
      %523 = vmatpush1.msra.mxu0 %v493
      %524 = vmatprep.subr.mxu0 0.0
      %525 = vmatpush1.msra.mxu0 %v494
      %526 = vmatprep.subr.mxu0 0.0
      %527 = vmatpush1.msra.mxu0 %v495
      %528 = vmatprep.subr.mxu0 0.0
      %529 = vmatpush1.msra.mxu0 %v496
      %530 = vmatprep.subr.mxu0 0.0
      %531 = vmatpush1.msra.mxu0 %v497
      %532 = vmatprep.subr.mxu0 0.0
      %533 = vmatpush1.msra.mxu0 %v498
      %534 = vmatprep.subr.mxu0 0.0
      %535 = vmatpush1.msra.mxu0 %v499
      %536 = vmatprep.subr.mxu0 0.0
      %537 = vmatpush1.msra.mxu0 %v500
      %538 = vmatprep.subr.mxu0 0.0
      %539 = vmatpush1.msra.mxu0 %v501
      %540 = vmatprep.subr.mxu0 0.0
      %541 = vmatpush1.msra.mxu0 %v502
      %542 = vmatprep.subr.mxu0 0.0
      %543 = vmatpush1.msra.mxu0 0.0
      %544 = vmatprep.subr.mxu0 0.0
      %545 = vmatpush1.msra.mxu0 0.0
      %546 = vmatprep.subr.mxu0 0.0
      %547 = vmatpush1.msra.mxu0 0.0
      %548 = vmatprep.subr.mxu0 0.0
      %549 = vmatpush1.msra.mxu0 0.0
      %550 = vmatprep.subr.mxu0 0.0
      %551 = vmatpush1.msra.mxu0 0.0
      %552 = vmatprep.subr.mxu0 0.0
      %553 = vmatpush1.msra.mxu0 0.0
      %554 = vmatprep.subr.mxu0 0.0
      %555 = vmatpush1.msra.mxu0 0.0
      %556 = vmatprep.subr.mxu0 0.0
      %557 = vmatpush1.msra.mxu0 0.0
      %558 = vmatprep.subr.mxu0 0.0
      %559 = vmatpush1.msra.mxu0 0.0
      %560 = vmatprep.subr.mxu0 0.0
      %561 = vmatpush1.msra.mxu0 0.0
      %562 = vmatprep.subr.mxu0 0.0
      %563 = vmatpush1.msra.mxu0 0.0
      %564 = vmatprep.subr.mxu0 0.0
      %565 = vmatpush1.msra.mxu0 0.0
      %566 = vmatprep.subr.mxu0 0.0
      %567 = vmatpush1.msra.mxu0 0.0
      %568 = vmatprep.subr.mxu0 0.0
      %569 = vmatpush1.msra.mxu0 0.0
      %570 = vmatprep.subr.mxu0 0.0
      %571 = vmatpush1.msra.mxu0 0.0
      %572 = vmatprep.subr.mxu0 0.0
      %573 = vmatpush1.msra.mxu0 0.0
      %574 = vmatprep.mubr.f32.mxu0 0.0
      %575 = vmatmul.mubr.f32.gmra.mrb[0].mxu0 %v485
      %v576 = vpop.f32.mrb[0].mxu0
      %v577 = vadd.f32 %v508, %v576
      %v578 = vpop.f32.mrb[0].mxu0
      %579 = vmatprep.mubr.f32.mxu0 0.0
      %580 = vmatmul.mubr.f32.gmra.mrb[0].mxu0 %v486
      %v581 = vpop.f32.mrb[0].mxu0
      %v582 = vadd.f32 %v508, %v581
      %v583 = vpop.f32.mrb[0].mxu0
      %584 = vdwg.mxu0
      %585 = vst [vmem:[%s278] sm:$0xff] %v577
      %586 = vst [vmem:[%s278 + $0x8] sm:$0xff] %v582
      %p587 = scmp.lt.s32.totalorder %s18, 3
      %s588 = scalar_select %p587, %s18, 3
      %s589 = smul.addr %s588, 2
      %s590 = smul.addr %s589, 8
      %s591 = scalar_lea.vmem %s7, %s590
      // Predicated region
      $region49: #{multi_scale_time_mixer.3} parent=47 // pred_check
        %p592 = pneg %p188
      $region50: #{multi_scale_time_mixer.3} parent=47 // pred_check_branch
        %594 = sbr.rel (%p592) target = $region52
      $region51: #{multi_scale_time_mixer.3} parent=47 // pred_region
        _
      $region52: #{multi_scale_time_mixer.3} parent=47 // pred_fallthru
        _
    $region48: #{multi_scale_time_mixer.3} parent=5 // pred_fallthru
      _
    %p595 = scmp.le.s32.totalorder 2, %s13
    // Predicated region
    $region53: #{multi_scale_time_mixer.3} parent=5 // pred_check
      %p596 = pneg %p595
    $region54: #{multi_scale_time_mixer.3} parent=5 // pred_check_branch
      %598 = sbr.rel (%p596) target = $region56
    $region55: #{multi_scale_time_mixer.3} parent=5 // pred_region
      %s599 = ssub.s32 %s13, 2
      // Predicated region
      $region57: #{multi_scale_time_mixer.3} parent=55 // pred_check
        %p600 = pneg %p194
      $region58: #{multi_scale_time_mixer.3} parent=55 // pred_check_branch
        %602 = sbr.rel (%p600) target = $region60
      $region59: #{multi_scale_time_mixer.3} parent=55 // pred_region
        %p603 = scmp.lt.s32.totalorder %s19, 3
        %s604 = scalar_select %p603, %s19, 3
        %s605 = smul.addr %s604, 2
        %s606 = smul.addr %s605, 8
        %s607 = scalar_lea.vmem %s7, %s606
      $region60: #{multi_scale_time_mixer.3} parent=55 // pred_fallthru
        _
    $region56: #{multi_scale_time_mixer.3} parent=5 // pred_fallthru
      _
  $region6: #{multi_scale_time_mixer.3} parent=0 // loop_footer
    %s17 = sadd.s32 1, %s13
  $region7: #{multi_scale_time_mixer.3} parent=0 // loop_footer_branch
    %12 = sbr.rel target = $region3
  $region8: #{multi_scale_time_mixer.3} parent=0 // loop_exit
    _

// kernel: multi_scale_time_mixer.2
$region0: #{multi_scale_time_mixer.2}
  #allocation0 [shape = 'u32[]', space=smem, size = 0x4, offset = 0x4, fixed_abs, tag = 'smem constant byte address 0x4 - core index']
  #allocation1 [shape = 'u32[144,128]{1,0:T(1,128)}', space=vmem, size = 0x12000, scoped, tag = 'internal scratch']
  %s0 = inlined_call_operand.vmem [shape: f32[4,16,128], index: 0, kind: input, shape index: {}]
  %s1 = inlined_call_operand.vmem [shape: f32[16,128], index: 1, kind: input, shape index: {}]
  %s2 = inlined_call_operand.vmem [shape: f32[16,128], index: 2, kind: input, shape index: {}]
  %s3 = inlined_call_operand.vmem [shape: f32[128,128], index: 3, kind: input, shape index: {}]
  %s4 = inlined_call_operand.vmem [shape: f32[1,128], index: 4, kind: input, shape index: {}]
  %s5 = inlined_call_operand.vmem [shape: f32[128,128], index: 5, kind: input, shape index: {}]
  %s6 = inlined_call_operand.vmem [shape: f32[1,128], index: 6, kind: input, shape index: {}]
  %s7 = inlined_call_operand.vmem [shape: f32[4,16,128], index: 7, kind: output, shape index: {}]
  %s8 = sld [smem:[#allocation0]]
  $region61: #{multi_scale_time_mixer.2} parent=0
    _
  %s10 = ssub.s32 1, %s8
  %s11 = scalar_select 0, %s10, %s8
  loop: start=0, step=1, limit=6
  $region2: #{multi_scale_time_mixer.2} parent=0 // loop_pre_header
    _
  $region3: #{multi_scale_time_mixer.2} parent=0 // loop_header
    %s13 = sphi 0, %s17
    %p14 = scmp.ge.s32.totalorder %s13, 6
    %s23 = sphi 0, %s25
    %s26 = sphi 0, %s23
    %s27 = sphi 0, %s26
    %s43 = sphi 0, %s27
    %s47 = sphi 0, %s47
    %s49 = sphi 0, %s47
    %s50 = sphi 0, %s49
    %s64 = sphi 0, %s50
    %s68 = sphi 0, %s68
    %s70 = sphi 0, %s68
    %s71 = sphi 0, %s70
    %s85 = sphi 0, %s71
    %s89 = sphi 0, %s89
    %s91 = sphi 0, %s89
    %s92 = sphi 0, %s91
    %s106 = sphi 0, %s92
    %s110 = sphi 0, %s110
    %s112 = sphi 0, %s110
    %s113 = sphi 0, %s112
    %s127 = sphi 0, %s113
    %s131 = sphi 0, %s131
    %s133 = sphi 0, %s131
    %s134 = sphi 0, %s133
    %s148 = sphi 0, %s134
    %s152 = sphi 0, %s152
    %s154 = sphi 0, %s152
    %s155 = sphi 0, %s154
    %s169 = sphi 0, %s155
    %s175 = sphi 0, %s177
    %s178 = sphi 0, %s175
    %s179 = sphi 0, %s178
    %s195 = sphi 0, %s179
  $region4: #{multi_scale_time_mixer.2} parent=0 // loop_header_branch
    %16 = sbr.rel (%p14) target = $region8
  $region5: #{multi_scale_time_mixer.2} parent=0 // loop_body
    %s18 = ssub.s32 %s13, 1
    %s19 = ssub.s32 %s13, 2
    %s20 = sadd.s32 %s13, 1
    %s21 = ssub.s32 %s13, %s20
    %p22 = scmp.eq.s32.totalorder %s21, 0
    %s24 = sadd.s32 %s23, 1
    %s25 = scalar_select %p22, %s23, %s24
    %p28 = pneg %p22
    %p29 = scmp.eq.s32.totalorder %s13, 3
    %p30 = por %p28, %p29
    %p31 = scmp.ne.s32.totalorder %s23, %s26
    %p32 = scmp.eq.s32.totalorder %s13, 0
    %p33 = por %p31, %p32
    %p34 = scmp.ne.s32.totalorder %s23, %s26
    %p35 = scmp.eq.s32.totalorder %s18, 3
    %p36 = por %p34, %p35
    %p37 = scmp.ne.s32.totalorder %s26, %s27
    %p38 = scmp.eq.s32.totalorder %s18, 0
    %p39 = por %p37, %p38
    %p40 = scmp.ne.s32.totalorder %s26, %s27
    %p41 = scmp.eq.s32.totalorder %s19, 3
    %p42 = por %p40, %p41
    %p44 = scmp.ne.s32.totalorder %s27, %s43
    %p45 = scmp.eq.s32.totalorder %s19, 0
    %p46 = por %p44, %p45
    %s48 = sadd.s32 %s47, 1
    %p51 = scmp.eq.s32.totalorder %s13, 3
    %p52 = scmp.ne.s32.totalorder %s47, %s49
    %p53 = scmp.eq.s32.totalorder %s13, 0
    %p54 = por %p52, %p53
    %p55 = scmp.ne.s32.totalorder %s47, %s49
    %p56 = scmp.eq.s32.totalorder %s18, 3
    %p57 = por %p55, %p56
    %p58 = scmp.ne.s32.totalorder %s49, %s50
    %p59 = scmp.eq.s32.totalorder %s18, 0
    %p60 = por %p58, %p59
    %p61 = scmp.ne.s32.totalorder %s49, %s50
    %p62 = scmp.eq.s32.totalorder %s19, 3
    %p63 = por %p61, %p62
    %p65 = scmp.ne.s32.totalorder %s50, %s64
    %p66 = scmp.eq.s32.totalorder %s19, 0
    %p67 = por %p65, %p66
    %s69 = sadd.s32 %s68, 1
    %p72 = scmp.eq.s32.totalorder %s13, 3
    %p73 = scmp.ne.s32.totalorder %s68, %s70
    %p74 = scmp.eq.s32.totalorder %s13, 0
    %p75 = por %p73, %p74
    %p76 = scmp.ne.s32.totalorder %s68, %s70
    %p77 = scmp.eq.s32.totalorder %s18, 3
    %p78 = por %p76, %p77
    %p79 = scmp.ne.s32.totalorder %s70, %s71
    %p80 = scmp.eq.s32.totalorder %s18, 0
    %p81 = por %p79, %p80
    %p82 = scmp.ne.s32.totalorder %s70, %s71
    %p83 = scmp.eq.s32.totalorder %s19, 3
    %p84 = por %p82, %p83
    %p86 = scmp.ne.s32.totalorder %s71, %s85
    %p87 = scmp.eq.s32.totalorder %s19, 0
    %p88 = por %p86, %p87
    %s90 = sadd.s32 %s89, 1
    %p93 = scmp.eq.s32.totalorder %s13, 3
    %p94 = scmp.ne.s32.totalorder %s89, %s91
    %p95 = scmp.eq.s32.totalorder %s13, 0
    %p96 = por %p94, %p95
    %p97 = scmp.ne.s32.totalorder %s89, %s91
    %p98 = scmp.eq.s32.totalorder %s18, 3
    %p99 = por %p97, %p98
    %p100 = scmp.ne.s32.totalorder %s91, %s92
    %p101 = scmp.eq.s32.totalorder %s18, 0
    %p102 = por %p100, %p101
    %p103 = scmp.ne.s32.totalorder %s91, %s92
    %p104 = scmp.eq.s32.totalorder %s19, 3
    %p105 = por %p103, %p104
    %p107 = scmp.ne.s32.totalorder %s92, %s106
    %p108 = scmp.eq.s32.totalorder %s19, 0
    %p109 = por %p107, %p108
    %s111 = sadd.s32 %s110, 1
    %p114 = scmp.eq.s32.totalorder %s13, 3
    %p115 = scmp.ne.s32.totalorder %s110, %s112
    %p116 = scmp.eq.s32.totalorder %s13, 0
    %p117 = por %p115, %p116
    %p118 = scmp.ne.s32.totalorder %s110, %s112
    %p119 = scmp.eq.s32.totalorder %s18, 3
    %p120 = por %p118, %p119
    %p121 = scmp.ne.s32.totalorder %s112, %s113
    %p122 = scmp.eq.s32.totalorder %s18, 0
    %p123 = por %p121, %p122
    %p124 = scmp.ne.s32.totalorder %s112, %s113
    %p125 = scmp.eq.s32.totalorder %s19, 3
    %p126 = por %p124, %p125
    %p128 = scmp.ne.s32.totalorder %s113, %s127
    %p129 = scmp.eq.s32.totalorder %s19, 0
    %p130 = por %p128, %p129
    %s132 = sadd.s32 %s131, 1
    %p135 = scmp.eq.s32.totalorder %s13, 3
    %p136 = scmp.ne.s32.totalorder %s131, %s133
    %p137 = scmp.eq.s32.totalorder %s13, 0
    %p138 = por %p136, %p137
    %p139 = scmp.ne.s32.totalorder %s131, %s133
    %p140 = scmp.eq.s32.totalorder %s18, 3
    %p141 = por %p139, %p140
    %p142 = scmp.ne.s32.totalorder %s133, %s134
    %p143 = scmp.eq.s32.totalorder %s18, 0
    %p144 = por %p142, %p143
    %p145 = scmp.ne.s32.totalorder %s133, %s134
    %p146 = scmp.eq.s32.totalorder %s19, 3
    %p147 = por %p145, %p146
    %p149 = scmp.ne.s32.totalorder %s134, %s148
    %p150 = scmp.eq.s32.totalorder %s19, 0
    %p151 = por %p149, %p150
    %s153 = sadd.s32 %s152, 1
    %p156 = scmp.eq.s32.totalorder %s13, 3
    %p157 = scmp.ne.s32.totalorder %s152, %s154
    %p158 = scmp.eq.s32.totalorder %s13, 0
    %p159 = por %p157, %p158
    %p160 = scmp.ne.s32.totalorder %s152, %s154
    %p161 = scmp.eq.s32.totalorder %s18, 3
    %p162 = por %p160, %p161
    %p163 = scmp.ne.s32.totalorder %s154, %s155
    %p164 = scmp.eq.s32.totalorder %s18, 0
    %p165 = por %p163, %p164
    %p166 = scmp.ne.s32.totalorder %s154, %s155
    %p167 = scmp.eq.s32.totalorder %s19, 3
    %p168 = por %p166, %p167
    %p170 = scmp.ne.s32.totalorder %s155, %s169
    %p171 = scmp.eq.s32.totalorder %s19, 0
    %p172 = por %p170, %p171
    %s173 = ssub.s32 %s13, %s20
    %p174 = scmp.eq.s32.totalorder %s173, 0
    %s176 = sadd.s32 %s175, 1
    %s177 = scalar_select %p174, %s175, %s176
    %p180 = pneg %p174
    %p181 = scmp.eq.s32.totalorder %s13, 3
    %p182 = por %p180, %p181
    %p183 = scmp.ne.s32.totalorder %s175, %s178
    %p184 = scmp.eq.s32.totalorder %s13, 0
    %p185 = por %p183, %p184
    %p186 = scmp.ne.s32.totalorder %s175, %s178
    %p187 = scmp.eq.s32.totalorder %s18, 3
    %p188 = por %p186, %p187
    %p189 = scmp.ne.s32.totalorder %s178, %s179
    %p190 = scmp.eq.s32.totalorder %s18, 0
    %p191 = por %p189, %p190
    %p192 = scmp.ne.s32.totalorder %s178, %s179
    %p193 = scmp.eq.s32.totalorder %s19, 3
    %p194 = por %p192, %p193
    %p196 = scmp.ne.s32.totalorder %s179, %s195
    %p197 = scmp.eq.s32.totalorder %s19, 0
    %p198 = por %p196, %p197
    %p199 = scmp.le.s32.totalorder 1, %s13
    %p200 = scmp.lt.s32.totalorder %s13, 5
    %p201 = pnand %p199, %p200
    %p202 = pneg %p201
    // Predicated region
    $region9: #{multi_scale_time_mixer.2} parent=5 // pred_check
      _
    $region10: #{multi_scale_time_mixer.2} parent=5 // pred_check_branch
      %204 = sbr.rel (%p201) target = $region12
    $region11: #{multi_scale_time_mixer.2} parent=5 // pred_region
      %s205 = ssub.s32 %s13, 1
      // Predicated region
      $region13: #{multi_scale_time_mixer.2} parent=11 // pred_check
        %p206 = pneg %p60
      $region14: #{multi_scale_time_mixer.2} parent=11 // pred_check_branch
        %208 = sbr.rel (%p206) target = $region16
      $region15: #{multi_scale_time_mixer.2} parent=11 // pred_region
        _
      $region16: #{multi_scale_time_mixer.2} parent=11 // pred_fallthru
        _
      // Predicated region
      $region17: #{multi_scale_time_mixer.2} parent=11 // pred_check
        %p209 = pneg %p81
      $region18: #{multi_scale_time_mixer.2} parent=11 // pred_check_branch
        %211 = sbr.rel (%p209) target = $region20
      $region19: #{multi_scale_time_mixer.2} parent=11 // pred_region
        _
      $region20: #{multi_scale_time_mixer.2} parent=11 // pred_fallthru
        _
      // Predicated region
      $region21: #{multi_scale_time_mixer.2} parent=11 // pred_check
        %p212 = pneg %p102
      $region22: #{multi_scale_time_mixer.2} parent=11 // pred_check_branch
        %214 = sbr.rel (%p212) target = $region24
      $region23: #{multi_scale_time_mixer.2} parent=11 // pred_region
        _
      $region24: #{multi_scale_time_mixer.2} parent=11 // pred_fallthru
        _
      // Predicated region
      $region25: #{multi_scale_time_mixer.2} parent=11 // pred_check
        %p215 = pneg %p123
      $region26: #{multi_scale_time_mixer.2} parent=11 // pred_check_branch
        %217 = sbr.rel (%p215) target = $region28
      $region27: #{multi_scale_time_mixer.2} parent=11 // pred_region
        _
      $region28: #{multi_scale_time_mixer.2} parent=11 // pred_fallthru
        _
      // Predicated region
      $region29: #{multi_scale_time_mixer.2} parent=11 // pred_check
        %p218 = pneg %p144
      $region30: #{multi_scale_time_mixer.2} parent=11 // pred_check_branch
        %220 = sbr.rel (%p218) target = $region32
      $region31: #{multi_scale_time_mixer.2} parent=11 // pred_region
        _
      $region32: #{multi_scale_time_mixer.2} parent=11 // pred_fallthru
        _
      // Predicated region
      $region33: #{multi_scale_time_mixer.2} parent=11 // pred_check
        %p221 = pneg %p165
      $region34: #{multi_scale_time_mixer.2} parent=11 // pred_check_branch
        %223 = sbr.rel (%p221) target = $region36
      $region35: #{multi_scale_time_mixer.2} parent=11 // pred_region
        _
      $region36: #{multi_scale_time_mixer.2} parent=11 // pred_fallthru
        _
    $region12: #{multi_scale_time_mixer.2} parent=5 // pred_fallthru
      _
    %p224 = scmp.lt.s32.totalorder %s13, 4
    // Predicated region
    $region37: #{multi_scale_time_mixer.2} parent=5 // pred_check
      %p225 = pneg %p224
    $region38: #{multi_scale_time_mixer.2} parent=5 // pred_check_branch
      %227 = sbr.rel (%p225) target = $region40
    $region39: #{multi_scale_time_mixer.2} parent=5 // pred_region
      // Predicated region
      $region41: #{multi_scale_time_mixer.2} parent=39 // pred_check
        %p228 = pneg %p33
      $region42: #{multi_scale_time_mixer.2} parent=39 // pred_check_branch
        %230 = sbr.rel (%p228) target = $region44
      $region43: #{multi_scale_time_mixer.2} parent=39 // pred_region
        %p231 = scmp.lt.s32.totalorder %s13, 3
        %s232 = scalar_select %p231, %s13, 3
        %s233 = smul.addr %s232, 2
        %s234 = smul.addr %s233, 8
        %s235 = scalar_lea.vmem %s0, %s234
      $region44: #{multi_scale_time_mixer.2} parent=39 // pred_fallthru
        _
    $region40: #{multi_scale_time_mixer.2} parent=5 // pred_fallthru
      _
    %p236 = scmp.le.s32.totalorder 1, %s13
    %p237 = scmp.lt.s32.totalorder %s13, 5
    %p238 = pnand %p236, %p237
    %p239 = pneg %p238
    // Predicated region
    $region45: #{multi_scale_time_mixer.2} parent=5 // pred_check
      _
    $region46: #{multi_scale_time_mixer.2} parent=5 // pred_check_branch
      %241 = sbr.rel (%p238) target = $region48
    $region47: #{multi_scale_time_mixer.2} parent=5 // pred_region
      %s242 = ssub.s32 %s13, 1
      %p243 = scmp.lt.s32.totalorder %s18, 3
      %s244 = scalar_select %p243, %s18, 3
      %s245 = smul.addr %s244, 2
      %s246 = smul.addr %s245, 8
      %s247 = scalar_lea.vmem %s0, %s246
      %p248 = pneg %p39
      %p249 = pneg %p36
      %p250 = pneg %p60
      %p251 = pneg %p57
      %p252 = pneg %p81
      %p253 = pneg %p78
      %p254 = pneg %p102
      %p255 = pneg %p99
      %p256 = pneg %p123
      %p257 = pneg %p120
      %p258 = pneg %p144
      %p259 = pneg %p141
      %p260 = pneg %p165
      %p261 = pneg %p162
      %p262 = pneg %p191
      %p263 = pneg %p188
      %p264 = scmp.lt.s32.totalorder %s18, 3
      %s265 = scalar_select %p264, %s18, 3
      %s266 = smul.addr %s265, 2
      %s267 = smul.addr %s266, 8
      %s268 = scalar_lea.vmem %s7, %s267
      %p269 = scmp.lt.s32.totalorder %s18, 3
      %s270 = scalar_select %p269, %s18, 3
      %s271 = smul.addr %s270, 2
      %s272 = smul.addr %s271, 8
      %s273 = scalar_lea.vmem %s0, %s272
      %p274 = scmp.lt.s32.totalorder %s18, 3
      %s275 = scalar_select %p274, %s18, 3
      %s276 = smul.addr %s275, 2
      %s277 = smul.addr %s276, 8
      %s278 = scalar_lea.vmem %s7, %s277
      %v279 = vld [vmem:[%s273] sm:$0xff]
      %v280 = vld [vmem:[%s273 + $0x8] sm:$0xff]
      %v281 = vlaneseq
      %v282 = vand.u32 %v281, 127
      %vm283 = vcmp.lt.s32.totalorder %v282, 16
      %v284 = vsel %vm283, 1, 0
      %v285 = vcvt.s32.f32 %v284
      %v286 = vmul.f32 %v279, %v285
      %v287 = vmul.f32 %v280, %v285
      %288 = vadd.xlane.f32.xlu0 %v286
      %v289 = vpop.xlane.xlu0 %288
      %290 = vadd.xlane.f32.xlu0 %v287
      %v291 = vpop.xlane.xlu0 %290
      %v292 = vadd.f32 %v289, %v291
      %v293 = vrot.slane %v292, 4
      %v294 = vadd.f32 %v292, %v293
      %v295 = vrot.slane %v294, 2
      %v296 = vadd.f32 %v294, %v295
      %v297 = vrot.slane %v296, 1
      %v298 = vadd.f32 %v296, %v297
      %v299 = vmul.f32 %v298, 0.00390625
      %v300 = vsub.f32 %v279, %v299
      %v301 = vsub.f32 %v280, %v299
      %v302 = vmul.f32 %v300, %v285
      %v303 = vmul.f32 %v301, %v285
      %v304 = vmul.f32 %v302, %v302
      %v305 = vmul.f32 %v303, %v303
      %306 = vadd.xlane.f32.xlu0 %v304
      %v307 = vpop.xlane.xlu0 %306
      %308 = vadd.xlane.f32.xlu0 %v305
      %v309 = vpop.xlane.xlu0 %308
      %v310 = vadd.f32 %v307, %v309
      %v311 = vrot.slane %v310, 4
      %v312 = vadd.f32 %v310, %v311
      %v313 = vrot.slane %v312, 2
      %v314 = vadd.f32 %v312, %v313
      %v315 = vrot.slane %v314, 1
      %v316 = vadd.f32 %v314, %v315
      %v317 = vmul.f32 %v316, 0.00390625
      %v318 = vadd.f32 %v317, 1e-05
      %v319 = vrsqrt.pop %v318
      %v320 = vmul.f32 %v300, %v319
      %v321 = vmul.f32 %v301, %v319
      %v322 = vld [vmem:[%s1] sm:$0xff]
      %v323 = vld [vmem:[%s1 + $0x8] sm:$0xff]
      %v324 = vmul.f32 %v320, %v322
      %v325 = vmul.f32 %v321, %v323
      %v326 = vld [vmem:[%s2] sm:$0xff]
      %v327 = vld [vmem:[%s2 + $0x8] sm:$0xff]
      %v328 = vadd.f32 %v324, %v326
      %v329 = vadd.f32 %v325, %v327
      %v330 = vld [vmem:[%s3] sm:$0xff]
      %v331 = vld [vmem:[%s3 + $0x8] sm:$0xff]
      %v332 = vld [vmem:[%s3 + $0x10] sm:$0xff]
      %v333 = vld [vmem:[%s3 + $0x18] sm:$0xff]
      %v334 = vld [vmem:[%s3 + $0x20] sm:$0xff]
      %v335 = vld [vmem:[%s3 + $0x28] sm:$0xff]
      %v336 = vld [vmem:[%s3 + $0x30] sm:$0xff]
      %v337 = vld [vmem:[%s3 + $0x38] sm:$0xff]
      %v338 = vld [vmem:[%s3 + $0x40] sm:$0xff]
      %v339 = vld [vmem:[%s3 + $0x48] sm:$0xff]
      %v340 = vld [vmem:[%s3 + $0x50] sm:$0xff]
      %v341 = vld [vmem:[%s3 + $0x58] sm:$0xff]
      %v342 = vld [vmem:[%s3 + $0x60] sm:$0xff]
      %v343 = vld [vmem:[%s3 + $0x68] sm:$0xff]
      %v344 = vld [vmem:[%s3 + $0x70] sm:$0xff]
      %v345 = vld [vmem:[%s3 + $0x78] sm:$0xff]
      %v346 = vld [vmem:[%s4] sm:$0x1]
      %v348 = vlaneseq
      %v349 = vshrl.u32 %v348, 7
      %v350 = vsub.s32 0, %v349
      %v351 = vrot.slane %v346, %v350
      %353 = vmatprep.subr.mxu0 0.0
      %354 = vmatpush1.msra.mxu0 %v330
      %355 = vmatprep.subr.mxu0 0.0
      %356 = vmatpush1.msra.mxu0 %v331
      %357 = vmatprep.subr.mxu0 0.0
      %358 = vmatpush1.msra.mxu0 %v332
      %359 = vmatprep.subr.mxu0 0.0
      %360 = vmatpush1.msra.mxu0 %v333
      %361 = vmatprep.subr.mxu0 0.0
      %362 = vmatpush1.msra.mxu0 %v334
      %363 = vmatprep.subr.mxu0 0.0
      %364 = vmatpush1.msra.mxu0 %v335
      %365 = vmatprep.subr.mxu0 0.0
      %366 = vmatpush1.msra.mxu0 %v336
      %367 = vmatprep.subr.mxu0 0.0
      %368 = vmatpush1.msra.mxu0 %v337
      %369 = vmatprep.subr.mxu0 0.0
      %370 = vmatpush1.msra.mxu0 %v338
      %371 = vmatprep.subr.mxu0 0.0
      %372 = vmatpush1.msra.mxu0 %v339
      %373 = vmatprep.subr.mxu0 0.0
      %374 = vmatpush1.msra.mxu0 %v340
      %375 = vmatprep.subr.mxu0 0.0
      %376 = vmatpush1.msra.mxu0 %v341
      %377 = vmatprep.subr.mxu0 0.0
      %378 = vmatpush1.msra.mxu0 %v342
      %379 = vmatprep.subr.mxu0 0.0
      %380 = vmatpush1.msra.mxu0 %v343
      %381 = vmatprep.subr.mxu0 0.0
      %382 = vmatpush1.msra.mxu0 %v344
      %383 = vmatprep.subr.mxu0 0.0
      %384 = vmatpush1.msra.mxu0 %v345
      %385 = vmatprep.subr.mxu0 0.0
      %386 = vmatpush1.msra.mxu0 0.0
      %387 = vmatprep.subr.mxu0 0.0
      %388 = vmatpush1.msra.mxu0 0.0
      %389 = vmatprep.subr.mxu0 0.0
      %390 = vmatpush1.msra.mxu0 0.0
      %391 = vmatprep.subr.mxu0 0.0
      %392 = vmatpush1.msra.mxu0 0.0
      %393 = vmatprep.subr.mxu0 0.0
      %394 = vmatpush1.msra.mxu0 0.0
      %395 = vmatprep.subr.mxu0 0.0
      %396 = vmatpush1.msra.mxu0 0.0
      %397 = vmatprep.subr.mxu0 0.0
      %398 = vmatpush1.msra.mxu0 0.0
      %399 = vmatprep.subr.mxu0 0.0
      %400 = vmatpush1.msra.mxu0 0.0
      %401 = vmatprep.subr.mxu0 0.0
      %402 = vmatpush1.msra.mxu0 0.0
      %403 = vmatprep.subr.mxu0 0.0
      %404 = vmatpush1.msra.mxu0 0.0
      %405 = vmatprep.subr.mxu0 0.0
      %406 = vmatpush1.msra.mxu0 0.0
      %407 = vmatprep.subr.mxu0 0.0
      %408 = vmatpush1.msra.mxu0 0.0
      %409 = vmatprep.subr.mxu0 0.0
      %410 = vmatpush1.msra.mxu0 0.0
      %411 = vmatprep.subr.mxu0 0.0
      %412 = vmatpush1.msra.mxu0 0.0
      %413 = vmatprep.subr.mxu0 0.0
      %414 = vmatpush1.msra.mxu0 0.0
      %415 = vmatprep.subr.mxu0 0.0
      %416 = vmatpush1.msra.mxu0 0.0
      %417 = vmatprep.mubr.f32.mxu0 0.0
      %418 = vmatmul.mubr.f32.gmra.mrb[0].mxu0 %v328
      %v419 = vpop.f32.mrb[0].mxu0
      %v420 = vadd.f32 %v351, %v419
      %v421 = vpop.f32.mrb[0].mxu0
      %422 = vmatprep.mubr.f32.mxu0 0.0
      %423 = vmatmul.mubr.f32.gmra.mrb[0].mxu0 %v329
      %v424 = vpop.f32.mrb[0].mxu0
      %v425 = vadd.f32 %v351, %v424
      %v426 = vpop.f32.mrb[0].mxu0
      %427 = vdwg.mxu0
      %v428 = vadd.f32 %v420, 3.0
      %v429 = vadd.f32 %v425, 3.0
      %v430 = vmax.f32 %v428, 0.0
      %v431 = vmax.f32 %v429, 0.0
      %v432 = vmin.f32 %v430, 6.0
      %v433 = vmin.f32 %v431, 6.0
      %v434 = vmul.f32 %v420, %v432
      %v435 = vmul.f32 %v425, %v433
      %v436 = vmul.f32 %v434, 0.16666667
      %v437 = vmul.f32 %v435, 0.16666667
      %v438 = vld [vmem:[%s5] sm:$0xff]
      %v439 = vld [vmem:[%s5 + $0x8] sm:$0xff]
      %v440 = vld [vmem:[%s5 + $0x10] sm:$0xff]
      %v441 = vld [vmem:[%s5 + $0x18] sm:$0xff]
      %v442 = vld [vmem:[%s5 + $0x20] sm:$0xff]
      %v443 = vld [vmem:[%s5 + $0x28] sm:$0xff]
      %v444 = vld [vmem:[%s5 + $0x30] sm:$0xff]
      %v445 = vld [vmem:[%s5 + $0x38] sm:$0xff]
      %v446 = vld [vmem:[%s5 + $0x40] sm:$0xff]
      %v447 = vld [vmem:[%s5 + $0x48] sm:$0xff]
      %v448 = vld [vmem:[%s5 + $0x50] sm:$0xff]
      %v449 = vld [vmem:[%s5 + $0x58] sm:$0xff]
      %v450 = vld [vmem:[%s5 + $0x60] sm:$0xff]
      %v451 = vld [vmem:[%s5 + $0x68] sm:$0xff]
      %v452 = vld [vmem:[%s5 + $0x70] sm:$0xff]
      %v453 = vld [vmem:[%s5 + $0x78] sm:$0xff]
      %v454 = vld [vmem:[%s6] sm:$0x1]
      %v456 = vlaneseq
      %v457 = vshrl.u32 %v456, 7
      %v458 = vsub.s32 0, %v457
      %v459 = vrot.slane %v454, %v458
      %461 = vmatprep.subr.mxu0 0.0
      %462 = vmatpush1.msra.mxu0 %v438
      %463 = vmatprep.subr.mxu0 0.0
      %464 = vmatpush1.msra.mxu0 %v439
      %465 = vmatprep.subr.mxu0 0.0
      %466 = vmatpush1.msra.mxu0 %v440
      %467 = vmatprep.subr.mxu0 0.0
      %468 = vmatpush1.msra.mxu0 %v441
      %469 = vmatprep.subr.mxu0 0.0
      %470 = vmatpush1.msra.mxu0 %v442
      %471 = vmatprep.subr.mxu0 0.0
      %472 = vmatpush1.msra.mxu0 %v443
      %473 = vmatprep.subr.mxu0 0.0
      %474 = vmatpush1.msra.mxu0 %v444
      %475 = vmatprep.subr.mxu0 0.0
      %476 = vmatpush1.msra.mxu0 %v445
      %477 = vmatprep.subr.mxu0 0.0
      %478 = vmatpush1.msra.mxu0 %v446
      %479 = vmatprep.subr.mxu0 0.0
      %480 = vmatpush1.msra.mxu0 %v447
      %481 = vmatprep.subr.mxu0 0.0
      %482 = vmatpush1.msra.mxu0 %v448
      %483 = vmatprep.subr.mxu0 0.0
      %484 = vmatpush1.msra.mxu0 %v449
      %485 = vmatprep.subr.mxu0 0.0
      %486 = vmatpush1.msra.mxu0 %v450
      %487 = vmatprep.subr.mxu0 0.0
      %488 = vmatpush1.msra.mxu0 %v451
      %489 = vmatprep.subr.mxu0 0.0
      %490 = vmatpush1.msra.mxu0 %v452
      %491 = vmatprep.subr.mxu0 0.0
      %492 = vmatpush1.msra.mxu0 %v453
      %493 = vmatprep.subr.mxu0 0.0
      %494 = vmatpush1.msra.mxu0 0.0
      %495 = vmatprep.subr.mxu0 0.0
      %496 = vmatpush1.msra.mxu0 0.0
      %497 = vmatprep.subr.mxu0 0.0
      %498 = vmatpush1.msra.mxu0 0.0
      %499 = vmatprep.subr.mxu0 0.0
      %500 = vmatpush1.msra.mxu0 0.0
      %501 = vmatprep.subr.mxu0 0.0
      %502 = vmatpush1.msra.mxu0 0.0
      %503 = vmatprep.subr.mxu0 0.0
      %504 = vmatpush1.msra.mxu0 0.0
      %505 = vmatprep.subr.mxu0 0.0
      %506 = vmatpush1.msra.mxu0 0.0
      %507 = vmatprep.subr.mxu0 0.0
      %508 = vmatpush1.msra.mxu0 0.0
      %509 = vmatprep.subr.mxu0 0.0
      %510 = vmatpush1.msra.mxu0 0.0
      %511 = vmatprep.subr.mxu0 0.0
      %512 = vmatpush1.msra.mxu0 0.0
      %513 = vmatprep.subr.mxu0 0.0
      %514 = vmatpush1.msra.mxu0 0.0
      %515 = vmatprep.subr.mxu0 0.0
      %516 = vmatpush1.msra.mxu0 0.0
      %517 = vmatprep.subr.mxu0 0.0
      %518 = vmatpush1.msra.mxu0 0.0
      %519 = vmatprep.subr.mxu0 0.0
      %520 = vmatpush1.msra.mxu0 0.0
      %521 = vmatprep.subr.mxu0 0.0
      %522 = vmatpush1.msra.mxu0 0.0
      %523 = vmatprep.subr.mxu0 0.0
      %524 = vmatpush1.msra.mxu0 0.0
      %525 = vmatprep.mubr.f32.mxu0 0.0
      %526 = vmatmul.mubr.f32.gmra.mrb[0].mxu0 %v436
      %v527 = vpop.f32.mrb[0].mxu0
      %v528 = vadd.f32 %v459, %v527
      %v529 = vpop.f32.mrb[0].mxu0
      %530 = vmatprep.mubr.f32.mxu0 0.0
      %531 = vmatmul.mubr.f32.gmra.mrb[0].mxu0 %v437
      %v532 = vpop.f32.mrb[0].mxu0
      %v533 = vadd.f32 %v459, %v532
      %v534 = vpop.f32.mrb[0].mxu0
      %535 = vdwg.mxu0
      %536 = vst [vmem:[%s278] sm:$0xff] %v528
      %537 = vst [vmem:[%s278 + $0x8] sm:$0xff] %v533
      %p538 = scmp.lt.s32.totalorder %s18, 3
      %s539 = scalar_select %p538, %s18, 3
      %s540 = smul.addr %s539, 2
      %s541 = smul.addr %s540, 8
      %s542 = scalar_lea.vmem %s7, %s541
      // Predicated region
      $region49: #{multi_scale_time_mixer.2} parent=47 // pred_check
        %p543 = pneg %p188
      $region50: #{multi_scale_time_mixer.2} parent=47 // pred_check_branch
        %545 = sbr.rel (%p543) target = $region52
      $region51: #{multi_scale_time_mixer.2} parent=47 // pred_region
        _
      $region52: #{multi_scale_time_mixer.2} parent=47 // pred_fallthru
        _
    $region48: #{multi_scale_time_mixer.2} parent=5 // pred_fallthru
      _
    %p546 = scmp.le.s32.totalorder 2, %s13
    // Predicated region
    $region53: #{multi_scale_time_mixer.2} parent=5 // pred_check
      %p547 = pneg %p546
    $region54: #{multi_scale_time_mixer.2} parent=5 // pred_check_branch
      %549 = sbr.rel (%p547) target = $region56
    $region55: #{multi_scale_time_mixer.2} parent=5 // pred_region
      %s550 = ssub.s32 %s13, 2
      // Predicated region
      $region57: #{multi_scale_time_mixer.2} parent=55 // pred_check
        %p551 = pneg %p194
      $region58: #{multi_scale_time_mixer.2} parent=55 // pred_check_branch
        %553 = sbr.rel (%p551) target = $region60
      $region59: #{multi_scale_time_mixer.2} parent=55 // pred_region
        %p554 = scmp.lt.s32.totalorder %s19, 3
        %s555 = scalar_select %p554, %s19, 3
        %s556 = smul.addr %s555, 2
        %s557 = smul.addr %s556, 8
        %s558 = scalar_lea.vmem %s7, %s557
      $region60: #{multi_scale_time_mixer.2} parent=55 // pred_fallthru
        _
    $region56: #{multi_scale_time_mixer.2} parent=5 // pred_fallthru
      _
  $region6: #{multi_scale_time_mixer.2} parent=0 // loop_footer
    %s17 = sadd.s32 1, %s13
  $region7: #{multi_scale_time_mixer.2} parent=0 // loop_footer_branch
    %12 = sbr.rel target = $region3
  $region8: #{multi_scale_time_mixer.2} parent=0 // loop_exit
    _

</llo_original>
